<compile_context>
chip_gen: v7x
topology: tpu7x:2x2x1
jax: 0.10.0
libtpu: 0.0.40
codegen_flags: <defaults>
</compile_context>

<pallas_src>
import math
import jax
import jax.numpy as jnp
from jax.experimental import pallas as pl
from jax.experimental.pallas import tpu as pltpu


# -----------------------------------------------------------------------------
# Fused FinalLayer kernel (whole forward, one HBM read of x / one write of out)
# -----------------------------------------------------------------------------
def _make_final_layer_kernel(has_skip, Cin, Cout):
    def kernel(x_ref, shift_ref, tbias_ref, *refs):
        if has_skip:
            (wskip_ref, bskip_ref, wgate_ref, bgate_ref, w1_ref, b1_ref,
             w2_ref, b2_ref, scale_ref, o_ref) = refs
        else:
            (wgate_ref, bgate_ref, w1_ref, b1_ref,
             w2_ref, b2_ref, scale_ref, o_ref) = refs

        x = x_ref[...]                                 # (Bt, Cin, HW) f32

        def conv1x1(h, w_ref, b_ref, n_out, n_in):
            # 1x1 conv as unrolled VPU scalar-broadcast MACs; weight/bias
            # scalars come from SMEM.  Avoids pathologically small (<0.1%
            # utilization) MXU matmuls at these channel counts.
            rows = []
            for n in range(n_out):
                acc = h[:, 0, :] * w_ref[n, 0] + b_ref[n]
                for c in range(1, n_in):
                    acc = acc + h[:, c, :] * w_ref[n, c]
                rows.append(acc)                       # (Bt, HW)
            return jnp.stack(rows, axis=1)             # (Bt, n_out, HW)

        def inorm_silu(h, eps=1e-5):
            # torch InstanceNorm2d defaults: affine=False, biased var over
            # spatial; followed by SiLU.  Stats reduce over the lane axis (XLU).
            mean = jnp.mean(h, axis=-1, keepdims=True)
            var = jnp.mean(jnp.square(h - mean), axis=-1, keepdims=True)
            hn = (h - mean) * jax.lax.rsqrt(var + eps)
            return hn * jax.nn.sigmoid(hn)

        # ---- identity path: (skip conv | identity) * sigmoid gate ------------
        gate = jax.nn.sigmoid(conv1x1(x, wgate_ref, bgate_ref, 1, Cin))
        if has_skip:
            identity = conv1x1(x, wskip_ref, bskip_ref, Cout, Cin)
        else:
            identity = x                               # Cin == Cout
        identity = identity * gate                     # (Bt, Cout, HW)

        # ---- layer1 -> time conditioning -> layer2 ----------------------------
        h = inorm_silu(conv1x1(x, w1_ref, b1_ref, Cin, Cin))
        h = h * (1.0 + shift_ref[...]) + tbias_ref[...]     # (Bt,Cin,1) bcast
        h = inorm_silu(conv1x1(h, w2_ref, b2_ref, Cout, Cin))

        # ---- residual + output scale ------------------------------------------
        o_ref[...] = identity + scale_ref[0] * h

    return kernel


def _pick_batch_block(B, Cin, Cout, HW, vmem_budget=8 << 20):
    # Rough f32 bytes live per sample: double-buffered x/out blocks plus the
    # f32 intermediates kept resident by the whole-sample InstanceNorm.
    per_sample = HW * (Cin + Cout) * 4 * 4 + HW * (4 * Cin + 4 * Cout) * 4
    max_bt = max(1, vmem_budget // max(per_sample, 1))
    best = 1
    for bt in range(1, B + 1):
        if B % bt:
            continue
        if bt > max_bt:
            break
        # keep >= 2 grid steps when B >= 2 so v7x's two TensorCores share work
        if B == 1 or B // bt >= 2:
            best = bt
    return best


def final_layer_forward(params, x_nchw, t_emb):
    B, Cin, H, W = x_nchw.shape
    HW = H * W
    Cout = params["conv2"]["w"].shape[0]
    has_skip = params["skip"] is not None

    # Native layout: NCHW -> (B, C, H*W) is a zero-copy reshape (no transpose).
    x = x_nchw.reshape(B, Cin, HW).astype(jnp.float32)

    # Tiny time-MLP (M == batch) stays in plain JAX.
    te = jnp.dot(t_emb.astype(jnp.float32), params["time"]["w"]) + params["time"]["b"]
    te = te * jax.nn.sigmoid(te)                       # SiLU, (B, 2*Cin)
    shift = te[:, :Cin].reshape(B, Cin, 1)
    tbias = te[:, Cin:].reshape(B, Cin, 1)

    Bt = _pick_batch_block(B, Cin, Cout, HW)
    grid = (B // Bt,)

    smem_spec = pl.BlockSpec(memory_space=pltpu.MemorySpace.SMEM)
    weight_args = []
    if has_skip:
        weight_args += [params["skip"]["w"], params["skip"]["b"]]
    weight_args += [params["gate"]["w"], params["gate"]["b"],
                    params["conv1"]["w"], params["conv1"]["b"],
                    params["conv2"]["w"], params["conv2"]["b"],
                    params["scale"]]

    in_specs = ([pl.BlockSpec((Bt, Cin, HW), lambda i: (i, 0, 0)),
                 pl.BlockSpec((Bt, Cin, 1), lambda i: (i, 0, 0)),
                 pl.BlockSpec((Bt, Cin, 1), lambda i: (i, 0, 0))]
                + [smem_spec] * len(weight_args))

    # Advisory cost estimate for XLA's scheduler (kept in sync with the body).
    mac_flops = 2 * HW * Cin * (Cin + 1 + Cout + (Cout if has_skip else 0))
    flops = int(B * (mac_flops + 20 * HW * (Cin + Cout)))
    transcendentals = int(B * (HW * (1 + Cin + Cout) + Cin + Cout))
    bytes_accessed = int(B * HW * (Cin + Cout) * 4 + 2 * B * Cin * 4
                         + sum(int(a.size) * 4 for a in weight_args))

    # Explicit VMEM budget: double-buffered x/out blocks + f32 intermediates.
    block_io = Bt * HW * (Cin + Cout) * 4
    interm = Bt * HW * (4 * Cin + 4 * Cout) * 4
    vmem_limit = int(min(max(4 * block_io + interm + (2 << 20), 4 << 20), 64 << 20))

    out = pl.pallas_call(
        _make_final_layer_kernel(has_skip, Cin, Cout),
        out_shape=jax.ShapeDtypeStruct((B, Cout, HW), jnp.float32),
        grid_spec=pltpu.PrefetchScalarGridSpec(
            num_scalar_prefetch=0,
            grid=grid,
            in_specs=in_specs,
            out_specs=pl.BlockSpec((Bt, Cout, HW), lambda i: (i, 0, 0)),
        ),
        compiler_params=pltpu.CompilerParams(
            dimension_semantics=("parallel",),
            vmem_limit_bytes=vmem_limit),
        cost_estimate=pl.CostEstimate(flops=flops,
                                      transcendentals=transcendentals,
                                      bytes_accessed=bytes_accessed),
    )(x, shift, tbias, *weight_args)

    return out.reshape(B, Cout, H, W)                  # zero-copy back to NCHW


# -----------------------------------------------------------------------------
# Parameters (torch-like uniform init; torch (Cout, Cin) layout, all f32)
# -----------------------------------------------------------------------------
class KeyGen:
    def __init__(self, seed=0):
        self.key = jax.random.PRNGKey(seed)

    def __call__(self):
        self.key, sub = jax.random.split(self.key)
        return sub


def _uniform(kg, shape, bound):
    return jax.random.uniform(kg(), shape, jnp.float32, -bound, bound)


def init_final_layer(kg, in_chans, out_chans, time_emb_dim):
    def conv1x1(cin, cout):
        bound = 1.0 / math.sqrt(cin)                   # kernel_size = 1
        return {"w": _uniform(kg, (cout, cin), bound),  # torch layout (Cout, Cin)
                "b": _uniform(kg, (cout,), bound)}

    def linear(fin, fout):
        bound = 1.0 / math.sqrt(fin)
        w = _uniform(kg, (fout, fin), bound)
        b = _uniform(kg, (fout,), bound)
        return {"w": w.T, "b": b}                      # (K, N), runs in plain JAX

    return {
        "conv1": conv1x1(in_chans, in_chans),
        "time": linear(time_emb_dim, in_chans * 2),
        "conv2": conv1x1(in_chans, out_chans),
        "skip": conv1x1(in_chans, out_chans) if in_chans != out_chans else None,
        "gate": conv1x1(in_chans, 1),
        "scale": jnp.ones((1,), jnp.float32),
    }


# -----------------------------------------------------------------------------
# Pure-JAX reference (f32 everywhere, mirrors the PyTorch module)
# -----------------------------------------------------------------------------
def final_layer_reference(params, x_nchw, t_emb):
    B, Cin, H, W = x_nchw.shape
    x = x_nchw.astype(jnp.float32)

    def conv1x1(h, p):
        return (jnp.einsum("bchw,oc->bohw", h, p["w"],
                           precision=jax.lax.Precision.HIGHEST)
                + p["b"][None, :, None, None])

    def inorm_silu(h, eps=1e-5):
        mean = h.mean(axis=(2, 3), keepdims=True)
        var = jnp.square(h - mean).mean(axis=(2, 3), keepdims=True)
        hn = (h - mean) * jax.lax.rsqrt(var + eps)
        return hn * jax.nn.sigmoid(hn)

    identity = conv1x1(x, params["skip"]) if params["skip"] is not None else x
    gate = jax.nn.sigmoid(conv1x1(x, params["gate"]))
    identity = identity * gate

    h = inorm_silu(conv1x1(x, params["conv1"]))
    te = jnp.dot(t_emb.astype(jnp.float32), params["time"]["w"]) + params["time"]["b"]
    te = te * jax.nn.sigmoid(te)
    shift, tbias = te[:, :Cin], te[:, Cin:]
    h = h * (1.0 + shift[:, :, None, None]) + tbias[:, :, None, None]
    h = inorm_silu(conv1x1(h, params["conv2"]))

    return identity + params["scale"][0] * h


# -----------------------------------------------------------------------------
if __name__ == "__main__":
    B, IN_CHANS, OUT_CHANS = 2, 4, 2
    H = W = 16
    TDIM = 32

    kg = KeyGen(0)
    params = init_final_layer(kg, IN_CHANS, OUT_CHANS, TDIM)

    key = jax.random.PRNGKey(0)
    kx, kt = jax.random.split(key)
    x = jax.random.normal(kx, (B, IN_CHANS, H, W), jnp.float32)   # NCHW like PyTorch
    t_emb = jax.random.normal(kt, (B, TDIM), jnp.float32)

    fwd = jax.jit(final_layer_forward)
    out = jax.block_until_ready(fwd(params, x, t_emb))

    assert out.shape == (B, OUT_CHANS, H, W), out.shape
    assert bool(jnp.all(jnp.isfinite(out)))

    ref = jax.block_until_ready(jax.jit(final_layer_reference)(params, x, t_emb))
    assert bool(jnp.allclose(out, ref, atol=1e-4, rtol=1e-3)), \
        float(jnp.max(jnp.abs(out - ref)))

    print("KERNEL_OK")
</pallas_src>

<mosaic_0001>
module attributes {stable_mosaic.version = 11 : i64} {
  func.func @kernel(%arg0: i32, %arg1: memref<1x4x256xf32, #tpu.memory_space<vmem>>, %arg2: memref<1x4x1xf32, #tpu.memory_space<vmem>>, %arg3: memref<1x4x1xf32, #tpu.memory_space<vmem>>, %arg4: memref<2x4xf32, #tpu.memory_space<smem>>, %arg5: memref<2xf32, #tpu.memory_space<smem>>, %arg6: memref<1x4xf32, #tpu.memory_space<smem>>, %arg7: memref<1xf32, #tpu.memory_space<smem>>, %arg8: memref<4x4xf32, #tpu.memory_space<smem>>, %arg9: memref<4xf32, #tpu.memory_space<smem>>, %arg10: memref<2x4xf32, #tpu.memory_space<smem>>, %arg11: memref<2xf32, #tpu.memory_space<smem>>, %arg12: memref<1xf32, #tpu.memory_space<smem>>, %arg13: memref<1x2x256xf32, #tpu.memory_space<vmem>>) attributes {dimension_semantics = [#tpu.dimension_semantics<parallel>], iteration_bounds = array<i64: 2>, scalar_prefetch = 0 : i64, scratch_operands = 0 : i64, tpu.core_type = #tpu.core_type<tc>, window_params = [{transform_indices = @transform_0, window_bounds = array<i64: 1, 4, 256>}, {transform_indices = @transform_1, window_bounds = array<i64: 1, 4, 1>}, {transform_indices = @transform_2, window_bounds = array<i64: 1, 4, 1>}, {transform_indices = @transform_3, window_bounds = array<i64: 2, 4>}, {transform_indices = @transform_4, window_bounds = array<i64: 2>}, {transform_indices = @transform_5, window_bounds = array<i64: 1, 4>}, {transform_indices = @transform_6, window_bounds = array<i64: 1>}, {transform_indices = @transform_7, window_bounds = array<i64: 4, 4>}, {transform_indices = @transform_8, window_bounds = array<i64: 4>}, {transform_indices = @transform_9, window_bounds = array<i64: 2, 4>}, {transform_indices = @transform_10, window_bounds = array<i64: 2>}, {transform_indices = @transform_11, window_bounds = array<i64: 1>}, {transform_indices = @transform_12, window_bounds = array<i64: 1, 2, 256>}]} {
    %c0 = arith.constant 0 : index
    %c0_0 = arith.constant 0 : index
    %c0_1 = arith.constant 0 : index
    %0 = vector.load %arg1[%c0, %c0_0, %c0_1] : memref<1x4x256xf32, #tpu.memory_space<vmem>>, vector<1x4x256xf32>
    %1 = vector.extract_strided_slice %0 {offsets = [0, 0, 0], sizes = [1, 1, 256], strides = [1, 1, 1]} : vector<1x4x256xf32> to vector<1x1x256xf32>
    %2 = vector.shape_cast %1 : vector<1x1x256xf32> to vector<1x256xf32>
    %c0_2 = arith.constant 0 : index
    %c0_3 = arith.constant 0 : index
    %3 = memref.load %arg6[%c0_2, %c0_3] : memref<1x4xf32, #tpu.memory_space<smem>>
    %4 = vector.broadcast %3 : f32 to vector<1x256xf32>
    %5 = arith.mulf %2, %4 : vector<1x256xf32>
    %c0_4 = arith.constant 0 : index
    %6 = memref.load %arg7[%c0_4] : memref<1xf32, #tpu.memory_space<smem>>
    %7 = vector.broadcast %6 : f32 to vector<1x256xf32>
    %8 = arith.addf %5, %7 : vector<1x256xf32>
    %9 = vector.extract_strided_slice %0 {offsets = [0, 1, 0], sizes = [1, 1, 256], strides = [1, 1, 1]} : vector<1x4x256xf32> to vector<1x1x256xf32>
    %10 = vector.shape_cast %9 : vector<1x1x256xf32> to vector<1x256xf32>
    %c0_5 = arith.constant 0 : index
    %c1 = arith.constant 1 : index
    %11 = memref.load %arg6[%c0_5, %c1] : memref<1x4xf32, #tpu.memory_space<smem>>
    %12 = vector.broadcast %11 : f32 to vector<1x256xf32>
    %13 = arith.mulf %10, %12 : vector<1x256xf32>
    %14 = arith.addf %8, %13 : vector<1x256xf32>
    %15 = vector.extract_strided_slice %0 {offsets = [0, 2, 0], sizes = [1, 1, 256], strides = [1, 1, 1]} : vector<1x4x256xf32> to vector<1x1x256xf32>
    %16 = vector.shape_cast %15 : vector<1x1x256xf32> to vector<1x256xf32>
    %c0_6 = arith.constant 0 : index
    %c2 = arith.constant 2 : index
    %17 = memref.load %arg6[%c0_6, %c2] : memref<1x4xf32, #tpu.memory_space<smem>>
    %18 = vector.broadcast %17 : f32 to vector<1x256xf32>
    %19 = arith.mulf %16, %18 : vector<1x256xf32>
    %20 = arith.addf %14, %19 : vector<1x256xf32>
    %21 = vector.extract_strided_slice %0 {offsets = [0, 3, 0], sizes = [1, 1, 256], strides = [1, 1, 1]} : vector<1x4x256xf32> to vector<1x1x256xf32>
    %22 = vector.shape_cast %21 : vector<1x1x256xf32> to vector<1x256xf32>
    %c0_7 = arith.constant 0 : index
    %c3 = arith.constant 3 : index
    %23 = memref.load %arg6[%c0_7, %c3] : memref<1x4xf32, #tpu.memory_space<smem>>
    %24 = vector.broadcast %23 : f32 to vector<1x256xf32>
    %25 = arith.mulf %22, %24 : vector<1x256xf32>
    %26 = arith.addf %20, %25 : vector<1x256xf32>
    %27 = vector.shape_cast %26 : vector<1x256xf32> to vector<1x1x256xf32>
    %28 = arith.negf %27 : vector<1x1x256xf32>
    %29 = math.exp %28 : vector<1x1x256xf32>
    %cst = arith.constant 1.000000e+00 : f32
    %30 = vector.broadcast %cst : f32 to vector<1x1x256xf32>
    %31 = arith.addf %30, %29 : vector<1x1x256xf32>
    %32 = arith.divf %30, %31 : vector<1x1x256xf32>
    %33 = vector.extract_strided_slice %0 {offsets = [0, 0, 0], sizes = [1, 1, 256], strides = [1, 1, 1]} : vector<1x4x256xf32> to vector<1x1x256xf32>
    %34 = vector.shape_cast %33 : vector<1x1x256xf32> to vector<1x256xf32>
    %c0_8 = arith.constant 0 : index
    %c0_9 = arith.constant 0 : index
    %35 = memref.load %arg4[%c0_8, %c0_9] : memref<2x4xf32, #tpu.memory_space<smem>>
    %36 = vector.broadcast %35 : f32 to vector<1x256xf32>
    %37 = arith.mulf %34, %36 : vector<1x256xf32>
    %c0_10 = arith.constant 0 : index
    %38 = memref.load %arg5[%c0_10] : memref<2xf32, #tpu.memory_space<smem>>
    %39 = vector.broadcast %38 : f32 to vector<1x256xf32>
    %40 = arith.addf %37, %39 : vector<1x256xf32>
    %41 = vector.extract_strided_slice %0 {offsets = [0, 1, 0], sizes = [1, 1, 256], strides = [1, 1, 1]} : vector<1x4x256xf32> to vector<1x1x256xf32>
    %42 = vector.shape_cast %41 : vector<1x1x256xf32> to vector<1x256xf32>
    %c0_11 = arith.constant 0 : index
    %c1_12 = arith.constant 1 : index
    %43 = memref.load %arg4[%c0_11, %c1_12] : memref<2x4xf32, #tpu.memory_space<smem>>
    %44 = vector.broadcast %43 : f32 to vector<1x256xf32>
    %45 = arith.mulf %42, %44 : vector<1x256xf32>
    %46 = arith.addf %40, %45 : vector<1x256xf32>
    %47 = vector.extract_strided_slice %0 {offsets = [0, 2, 0], sizes = [1, 1, 256], strides = [1, 1, 1]} : vector<1x4x256xf32> to vector<1x1x256xf32>
    %48 = vector.shape_cast %47 : vector<1x1x256xf32> to vector<1x256xf32>
    %c0_13 = arith.constant 0 : index
    %c2_14 = arith.constant 2 : index
    %49 = memref.load %arg4[%c0_13, %c2_14] : memref<2x4xf32, #tpu.memory_space<smem>>
    %50 = vector.broadcast %49 : f32 to vector<1x256xf32>
    %51 = arith.mulf %48, %50 : vector<1x256xf32>
    %52 = arith.addf %46, %51 : vector<1x256xf32>
    %53 = vector.extract_strided_slice %0 {offsets = [0, 3, 0], sizes = [1, 1, 256], strides = [1, 1, 1]} : vector<1x4x256xf32> to vector<1x1x256xf32>
    %54 = vector.shape_cast %53 : vector<1x1x256xf32> to vector<1x256xf32>
    %c0_15 = arith.constant 0 : index
    %c3_16 = arith.constant 3 : index
    %55 = memref.load %arg4[%c0_15, %c3_16] : memref<2x4xf32, #tpu.memory_space<smem>>
    %56 = vector.broadcast %55 : f32 to vector<1x256xf32>
    %57 = arith.mulf %54, %56 : vector<1x256xf32>
    %58 = arith.addf %52, %57 : vector<1x256xf32>
    %59 = vector.extract_strided_slice %0 {offsets = [0, 0, 0], sizes = [1, 1, 256], strides = [1, 1, 1]} : vector<1x4x256xf32> to vector<1x1x256xf32>
    %60 = vector.shape_cast %59 : vector<1x1x256xf32> to vector<1x256xf32>
    %c1_17 = arith.constant 1 : index
    %c0_18 = arith.constant 0 : index
    %61 = memref.load %arg4[%c1_17, %c0_18] : memref<2x4xf32, #tpu.memory_space<smem>>
    %62 = vector.broadcast %61 : f32 to vector<1x256xf32>
    %63 = arith.mulf %60, %62 : vector<1x256xf32>
    %c1_19 = arith.constant 1 : index
    %64 = memref.load %arg5[%c1_19] : memref<2xf32, #tpu.memory_space<smem>>
    %65 = vector.broadcast %64 : f32 to vector<1x256xf32>
    %66 = arith.addf %63, %65 : vector<1x256xf32>
    %67 = vector.extract_strided_slice %0 {offsets = [0, 1, 0], sizes = [1, 1, 256], strides = [1, 1, 1]} : vector<1x4x256xf32> to vector<1x1x256xf32>
    %68 = vector.shape_cast %67 : vector<1x1x256xf32> to vector<1x256xf32>
    %c1_20 = arith.constant 1 : index
    %c1_21 = arith.constant 1 : index
    %69 = memref.load %arg4[%c1_20, %c1_21] : memref<2x4xf32, #tpu.memory_space<smem>>
    %70 = vector.broadcast %69 : f32 to vector<1x256xf32>
    %71 = arith.mulf %68, %70 : vector<1x256xf32>
    %72 = arith.addf %66, %71 : vector<1x256xf32>
    %73 = vector.extract_strided_slice %0 {offsets = [0, 2, 0], sizes = [1, 1, 256], strides = [1, 1, 1]} : vector<1x4x256xf32> to vector<1x1x256xf32>
    %74 = vector.shape_cast %73 : vector<1x1x256xf32> to vector<1x256xf32>
    %c1_22 = arith.constant 1 : index
    %c2_23 = arith.constant 2 : index
    %75 = memref.load %arg4[%c1_22, %c2_23] : memref<2x4xf32, #tpu.memory_space<smem>>
    %76 = vector.broadcast %75 : f32 to vector<1x256xf32>
    %77 = arith.mulf %74, %76 : vector<1x256xf32>
    %78 = arith.addf %72, %77 : vector<1x256xf32>
    %79 = vector.extract_strided_slice %0 {offsets = [0, 3, 0], sizes = [1, 1, 256], strides = [1, 1, 1]} : vector<1x4x256xf32> to vector<1x1x256xf32>
    %80 = vector.shape_cast %79 : vector<1x1x256xf32> to vector<1x256xf32>
    %c1_24 = arith.constant 1 : index
    %c3_25 = arith.constant 3 : index
    %81 = memref.load %arg4[%c1_24, %c3_25] : memref<2x4xf32, #tpu.memory_space<smem>>
    %82 = vector.broadcast %81 : f32 to vector<1x256xf32>
    %83 = arith.mulf %80, %82 : vector<1x256xf32>
    %84 = arith.addf %78, %83 : vector<1x256xf32>
    %85 = vector.shape_cast %58 : vector<1x256xf32> to vector<1x1x256xf32>
    %86 = vector.shape_cast %84 : vector<1x256xf32> to vector<1x1x256xf32>
    %87 = tpu.concatenate %85, %86 in 1 : vector<1x1x256xf32>, vector<1x1x256xf32> -> vector<1x2x256xf32>
    %88 = vector.broadcast %32 : vector<1x1x256xf32> to vector<1x2x256xf32>
    %89 = arith.mulf %87, %88 : vector<1x2x256xf32>
    %90 = vector.extract_strided_slice %0 {offsets = [0, 0, 0], sizes = [1, 1, 256], strides = [1, 1, 1]} : vector<1x4x256xf32> to vector<1x1x256xf32>
    %91 = vector.shape_cast %90 : vector<1x1x256xf32> to vector<1x256xf32>
    %c0_26 = arith.constant 0 : index
    %c0_27 = arith.constant 0 : index
    %92 = memref.load %arg8[%c0_26, %c0_27] : memref<4x4xf32, #tpu.memory_space<smem>>
    %93 = vector.broadcast %92 : f32 to vector<1x256xf32>
    %94 = arith.mulf %91, %93 : vector<1x256xf32>
    %c0_28 = arith.constant 0 : index
    %95 = memref.load %arg9[%c0_28] : memref<4xf32, #tpu.memory_space<smem>>
    %96 = vector.broadcast %95 : f32 to vector<1x256xf32>
    %97 = arith.addf %94, %96 : vector<1x256xf32>
    %98 = vector.extract_strided_slice %0 {offsets = [0, 1, 0], sizes = [1, 1, 256], strides = [1, 1, 1]} : vector<1x4x256xf32> to vector<1x1x256xf32>
    %99 = vector.shape_cast %98 : vector<1x1x256xf32> to vector<1x256xf32>
    %c0_29 = arith.constant 0 : index
    %c1_30 = arith.constant 1 : index
    %100 = memref.load %arg8[%c0_29, %c1_30] : memref<4x4xf32, #tpu.memory_space<smem>>
    %101 = vector.broadcast %100 : f32 to vector<1x256xf32>
    %102 = arith.mulf %99, %101 : vector<1x256xf32>
    %103 = arith.addf %97, %102 : vector<1x256xf32>
    %104 = vector.extract_strided_slice %0 {offsets = [0, 2, 0], sizes = [1, 1, 256], strides = [1, 1, 1]} : vector<1x4x256xf32> to vector<1x1x256xf32>
    %105 = vector.shape_cast %104 : vector<1x1x256xf32> to vector<1x256xf32>
    %c0_31 = arith.constant 0 : index
    %c2_32 = arith.constant 2 : index
    %106 = memref.load %arg8[%c0_31, %c2_32] : memref<4x4xf32, #tpu.memory_space<smem>>
    %107 = vector.broadcast %106 : f32 to vector<1x256xf32>
    %108 = arith.mulf %105, %107 : vector<1x256xf32>
    %109 = arith.addf %103, %108 : vector<1x256xf32>
    %110 = vector.extract_strided_slice %0 {offsets = [0, 3, 0], sizes = [1, 1, 256], strides = [1, 1, 1]} : vector<1x4x256xf32> to vector<1x1x256xf32>
    %111 = vector.shape_cast %110 : vector<1x1x256xf32> to vector<1x256xf32>
    %c0_33 = arith.constant 0 : index
    %c3_34 = arith.constant 3 : index
    %112 = memref.load %arg8[%c0_33, %c3_34] : memref<4x4xf32, #tpu.memory_space<smem>>
    %113 = vector.broadcast %112 : f32 to vector<1x256xf32>
    %114 = arith.mulf %111, %113 : vector<1x256xf32>
    %115 = arith.addf %109, %114 : vector<1x256xf32>
    %116 = vector.extract_strided_slice %0 {offsets = [0, 0, 0], sizes = [1, 1, 256], strides = [1, 1, 1]} : vector<1x4x256xf32> to vector<1x1x256xf32>
    %117 = vector.shape_cast %116 : vector<1x1x256xf32> to vector<1x256xf32>
    %c1_35 = arith.constant 1 : index
    %c0_36 = arith.constant 0 : index
    %118 = memref.load %arg8[%c1_35, %c0_36] : memref<4x4xf32, #tpu.memory_space<smem>>
    %119 = vector.broadcast %118 : f32 to vector<1x256xf32>
    %120 = arith.mulf %117, %119 : vector<1x256xf32>
    %c1_37 = arith.constant 1 : index
    %121 = memref.load %arg9[%c1_37] : memref<4xf32, #tpu.memory_space<smem>>
    %122 = vector.broadcast %121 : f32 to vector<1x256xf32>
    %123 = arith.addf %120, %122 : vector<1x256xf32>
    %124 = vector.extract_strided_slice %0 {offsets = [0, 1, 0], sizes = [1, 1, 256], strides = [1, 1, 1]} : vector<1x4x256xf32> to vector<1x1x256xf32>
    %125 = vector.shape_cast %124 : vector<1x1x256xf32> to vector<1x256xf32>
    %c1_38 = arith.constant 1 : index
    %c1_39 = arith.constant 1 : index
    %126 = memref.load %arg8[%c1_38, %c1_39] : memref<4x4xf32, #tpu.memory_space<smem>>
    %127 = vector.broadcast %126 : f32 to vector<1x256xf32>
    %128 = arith.mulf %125, %127 : vector<1x256xf32>
    %129 = arith.addf %123, %128 : vector<1x256xf32>
    %130 = vector.extract_strided_slice %0 {offsets = [0, 2, 0], sizes = [1, 1, 256], strides = [1, 1, 1]} : vector<1x4x256xf32> to vector<1x1x256xf32>
    %131 = vector.shape_cast %130 : vector<1x1x256xf32> to vector<1x256xf32>
    %c1_40 = arith.constant 1 : index
    %c2_41 = arith.constant 2 : index
    %132 = memref.load %arg8[%c1_40, %c2_41] : memref<4x4xf32, #tpu.memory_space<smem>>
    %133 = vector.broadcast %132 : f32 to vector<1x256xf32>
    %134 = arith.mulf %131, %133 : vector<1x256xf32>
    %135 = arith.addf %129, %134 : vector<1x256xf32>
    %136 = vector.extract_strided_slice %0 {offsets = [0, 3, 0], sizes = [1, 1, 256], strides = [1, 1, 1]} : vector<1x4x256xf32> to vector<1x1x256xf32>
    %137 = vector.shape_cast %136 : vector<1x1x256xf32> to vector<1x256xf32>
    %c1_42 = arith.constant 1 : index
    %c3_43 = arith.constant 3 : index
    %138 = memref.load %arg8[%c1_42, %c3_43] : memref<4x4xf32, #tpu.memory_space<smem>>
    %139 = vector.broadcast %138 : f32 to vector<1x256xf32>
    %140 = arith.mulf %137, %139 : vector<1x256xf32>
    %141 = arith.addf %135, %140 : vector<1x256xf32>
    %142 = vector.extract_strided_slice %0 {offsets = [0, 0, 0], sizes = [1, 1, 256], strides = [1, 1, 1]} : vector<1x4x256xf32> to vector<1x1x256xf32>
    %143 = vector.shape_cast %142 : vector<1x1x256xf32> to vector<1x256xf32>
    %c2_44 = arith.constant 2 : index
    %c0_45 = arith.constant 0 : index
    %144 = memref.load %arg8[%c2_44, %c0_45] : memref<4x4xf32, #tpu.memory_space<smem>>
    %145 = vector.broadcast %144 : f32 to vector<1x256xf32>
    %146 = arith.mulf %143, %145 : vector<1x256xf32>
    %c2_46 = arith.constant 2 : index
    %147 = memref.load %arg9[%c2_46] : memref<4xf32, #tpu.memory_space<smem>>
    %148 = vector.broadcast %147 : f32 to vector<1x256xf32>
    %149 = arith.addf %146, %148 : vector<1x256xf32>
    %150 = vector.extract_strided_slice %0 {offsets = [0, 1, 0], sizes = [1, 1, 256], strides = [1, 1, 1]} : vector<1x4x256xf32> to vector<1x1x256xf32>
    %151 = vector.shape_cast %150 : vector<1x1x256xf32> to vector<1x256xf32>
    %c2_47 = arith.constant 2 : index
    %c1_48 = arith.constant 1 : index
    %152 = memref.load %arg8[%c2_47, %c1_48] : memref<4x4xf32, #tpu.memory_space<smem>>
    %153 = vector.broadcast %152 : f32 to vector<1x256xf32>
    %154 = arith.mulf %151, %153 : vector<1x256xf32>
    %155 = arith.addf %149, %154 : vector<1x256xf32>
    %156 = vector.extract_strided_slice %0 {offsets = [0, 2, 0], sizes = [1, 1, 256], strides = [1, 1, 1]} : vector<1x4x256xf32> to vector<1x1x256xf32>
    %157 = vector.shape_cast %156 : vector<1x1x256xf32> to vector<1x256xf32>
    %c2_49 = arith.constant 2 : index
    %c2_50 = arith.constant 2 : index
    %158 = memref.load %arg8[%c2_49, %c2_50] : memref<4x4xf32, #tpu.memory_space<smem>>
    %159 = vector.broadcast %158 : f32 to vector<1x256xf32>
    %160 = arith.mulf %157, %159 : vector<1x256xf32>
    %161 = arith.addf %155, %160 : vector<1x256xf32>
    %162 = vector.extract_strided_slice %0 {offsets = [0, 3, 0], sizes = [1, 1, 256], strides = [1, 1, 1]} : vector<1x4x256xf32> to vector<1x1x256xf32>
    %163 = vector.shape_cast %162 : vector<1x1x256xf32> to vector<1x256xf32>
    %c2_51 = arith.constant 2 : index
    %c3_52 = arith.constant 3 : index
    %164 = memref.load %arg8[%c2_51, %c3_52] : memref<4x4xf32, #tpu.memory_space<smem>>
    %165 = vector.broadcast %164 : f32 to vector<1x256xf32>
    %166 = arith.mulf %163, %165 : vector<1x256xf32>
    %167 = arith.addf %161, %166 : vector<1x256xf32>
    %168 = vector.extract_strided_slice %0 {offsets = [0, 0, 0], sizes = [1, 1, 256], strides = [1, 1, 1]} : vector<1x4x256xf32> to vector<1x1x256xf32>
    %169 = vector.shape_cast %168 : vector<1x1x256xf32> to vector<1x256xf32>
    %c3_53 = arith.constant 3 : index
    %c0_54 = arith.constant 0 : index
    %170 = memref.load %arg8[%c3_53, %c0_54] : memref<4x4xf32, #tpu.memory_space<smem>>
    %171 = vector.broadcast %170 : f32 to vector<1x256xf32>
    %172 = arith.mulf %169, %171 : vector<1x256xf32>
    %c3_55 = arith.constant 3 : index
    %173 = memref.load %arg9[%c3_55] : memref<4xf32, #tpu.memory_space<smem>>
    %174 = vector.broadcast %173 : f32 to vector<1x256xf32>
    %175 = arith.addf %172, %174 : vector<1x256xf32>
    %176 = vector.extract_strided_slice %0 {offsets = [0, 1, 0], sizes = [1, 1, 256], strides = [1, 1, 1]} : vector<1x4x256xf32> to vector<1x1x256xf32>
    %177 = vector.shape_cast %176 : vector<1x1x256xf32> to vector<1x256xf32>
    %c3_56 = arith.constant 3 : index
    %c1_57 = arith.constant 1 : index
    %178 = memref.load %arg8[%c3_56, %c1_57] : memref<4x4xf32, #tpu.memory_space<smem>>
    %179 = vector.broadcast %178 : f32 to vector<1x256xf32>
    %180 = arith.mulf %177, %179 : vector<1x256xf32>
    %181 = arith.addf %175, %180 : vector<1x256xf32>
    %182 = vector.extract_strided_slice %0 {offsets = [0, 2, 0], sizes = [1, 1, 256], strides = [1, 1, 1]} : vector<1x4x256xf32> to vector<1x1x256xf32>
    %183 = vector.shape_cast %182 : vector<1x1x256xf32> to vector<1x256xf32>
    %c3_58 = arith.constant 3 : index
    %c2_59 = arith.constant 2 : index
    %184 = memref.load %arg8[%c3_58, %c2_59] : memref<4x4xf32, #tpu.memory_space<smem>>
    %185 = vector.broadcast %184 : f32 to vector<1x256xf32>
    %186 = arith.mulf %183, %185 : vector<1x256xf32>
    %187 = arith.addf %181, %186 : vector<1x256xf32>
    %188 = vector.extract_strided_slice %0 {offsets = [0, 3, 0], sizes = [1, 1, 256], strides = [1, 1, 1]} : vector<1x4x256xf32> to vector<1x1x256xf32>
    %189 = vector.shape_cast %188 : vector<1x1x256xf32> to vector<1x256xf32>
    %c3_60 = arith.constant 3 : index
    %c3_61 = arith.constant 3 : index
    %190 = memref.load %arg8[%c3_60, %c3_61] : memref<4x4xf32, #tpu.memory_space<smem>>
    %191 = vector.broadcast %190 : f32 to vector<1x256xf32>
    %192 = arith.mulf %189, %191 : vector<1x256xf32>
    %193 = arith.addf %187, %192 : vector<1x256xf32>
    %194 = vector.shape_cast %115 : vector<1x256xf32> to vector<1x1x256xf32>
    %195 = vector.shape_cast %141 : vector<1x256xf32> to vector<1x1x256xf32>
    %196 = vector.shape_cast %167 : vector<1x256xf32> to vector<1x1x256xf32>
    %197 = vector.shape_cast %193 : vector<1x256xf32> to vector<1x1x256xf32>
    %198 = tpu.concatenate %194, %195, %196, %197 in 1 : vector<1x1x256xf32>, vector<1x1x256xf32>, vector<1x1x256xf32>, vector<1x1x256xf32> -> vector<1x4x256xf32>
    %cst_62 = arith.constant dense<0.000000e+00> : vector<1x4xf32>
    %199 = vector.multi_reduction <add>, %198, %cst_62 [2] : vector<1x4x256xf32> to vector<1x4xf32>
    %200 = vector.shape_cast %199 : vector<1x4xf32> to vector<1x4x1xf32>
    %cst_63 = arith.constant 2.560000e+02 : f32
    %201 = vector.broadcast %cst_63 : f32 to vector<1x4x1xf32>
    %202 = arith.divf %200, %201 : vector<1x4x1xf32>
    %203 = vector.broadcast %202 : vector<1x4x1xf32> to vector<1x4x256xf32>
    %204 = arith.subf %198, %203 : vector<1x4x256xf32>
    %205 = arith.mulf %204, %204 : vector<1x4x256xf32>
    %cst_64 = arith.constant dense<0.000000e+00> : vector<1x4xf32>
    %206 = vector.multi_reduction <add>, %205, %cst_64 [2] : vector<1x4x256xf32> to vector<1x4xf32>
    %207 = vector.shape_cast %206 : vector<1x4xf32> to vector<1x4x1xf32>
    %cst_65 = arith.constant 2.560000e+02 : f32
    %208 = vector.broadcast %cst_65 : f32 to vector<1x4x1xf32>
    %209 = arith.divf %207, %208 : vector<1x4x1xf32>
    %210 = vector.broadcast %202 : vector<1x4x1xf32> to vector<1x4x256xf32>
    %211 = arith.subf %198, %210 : vector<1x4x256xf32>
    %cst_66 = arith.constant 9.99999974E-6 : f32
    %212 = vector.broadcast %cst_66 : f32 to vector<1x4x1xf32>
    %213 = arith.addf %209, %212 : vector<1x4x1xf32>
    %214 = math.rsqrt %213 : vector<1x4x1xf32>
    %215 = vector.broadcast %214 : vector<1x4x1xf32> to vector<1x4x256xf32>
    %216 = arith.mulf %211, %215 : vector<1x4x256xf32>
    %217 = arith.negf %216 : vector<1x4x256xf32>
    %218 = math.exp %217 : vector<1x4x256xf32>
    %cst_67 = arith.constant 1.000000e+00 : f32
    %219 = vector.broadcast %cst_67 : f32 to vector<1x4x256xf32>
    %220 = arith.addf %219, %218 : vector<1x4x256xf32>
    %221 = arith.divf %219, %220 : vector<1x4x256xf32>
    %222 = arith.mulf %216, %221 : vector<1x4x256xf32>
    %c0_68 = arith.constant 0 : index
    %c0_69 = arith.constant 0 : index
    %c0_70 = arith.constant 0 : index
    %223 = vector.load %arg2[%c0_68, %c0_69, %c0_70] : memref<1x4x1xf32, #tpu.memory_space<vmem>>, vector<1x4x1xf32>
    %cst_71 = arith.constant 1.000000e+00 : f32
    %224 = vector.broadcast %cst_71 : f32 to vector<1x4x1xf32>
    %225 = arith.addf %224, %223 : vector<1x4x1xf32>
    %226 = vector.broadcast %225 : vector<1x4x1xf32> to vector<1x4x256xf32>
    %227 = arith.mulf %222, %226 : vector<1x4x256xf32>
    %c0_72 = arith.constant 0 : index
    %c0_73 = arith.constant 0 : index
    %c0_74 = arith.constant 0 : index
    %228 = vector.load %arg3[%c0_72, %c0_73, %c0_74] : memref<1x4x1xf32, #tpu.memory_space<vmem>>, vector<1x4x1xf32>
    %229 = vector.broadcast %228 : vector<1x4x1xf32> to vector<1x4x256xf32>
    %230 = arith.addf %227, %229 : vector<1x4x256xf32>
    %231 = vector.extract_strided_slice %230 {offsets = [0, 0, 0], sizes = [1, 1, 256], strides = [1, 1, 1]} : vector<1x4x256xf32> to vector<1x1x256xf32>
    %232 = vector.shape_cast %231 : vector<1x1x256xf32> to vector<1x256xf32>
    %c0_75 = arith.constant 0 : index
    %c0_76 = arith.constant 0 : index
    %233 = memref.load %arg10[%c0_75, %c0_76] : memref<2x4xf32, #tpu.memory_space<smem>>
    %234 = vector.broadcast %233 : f32 to vector<1x256xf32>
    %235 = arith.mulf %232, %234 : vector<1x256xf32>
    %c0_77 = arith.constant 0 : index
    %236 = memref.load %arg11[%c0_77] : memref<2xf32, #tpu.memory_space<smem>>
    %237 = vector.broadcast %236 : f32 to vector<1x256xf32>
    %238 = arith.addf %235, %237 : vector<1x256xf32>
    %239 = vector.extract_strided_slice %230 {offsets = [0, 1, 0], sizes = [1, 1, 256], strides = [1, 1, 1]} : vector<1x4x256xf32> to vector<1x1x256xf32>
    %240 = vector.shape_cast %239 : vector<1x1x256xf32> to vector<1x256xf32>
    %c0_78 = arith.constant 0 : index
    %c1_79 = arith.constant 1 : index
    %241 = memref.load %arg10[%c0_78, %c1_79] : memref<2x4xf32, #tpu.memory_space<smem>>
    %242 = vector.broadcast %241 : f32 to vector<1x256xf32>
    %243 = arith.mulf %240, %242 : vector<1x256xf32>
    %244 = arith.addf %238, %243 : vector<1x256xf32>
    %245 = vector.extract_strided_slice %230 {offsets = [0, 2, 0], sizes = [1, 1, 256], strides = [1, 1, 1]} : vector<1x4x256xf32> to vector<1x1x256xf32>
    %246 = vector.shape_cast %245 : vector<1x1x256xf32> to vector<1x256xf32>
    %c0_80 = arith.constant 0 : index
    %c2_81 = arith.constant 2 : index
    %247 = memref.load %arg10[%c0_80, %c2_81] : memref<2x4xf32, #tpu.memory_space<smem>>
    %248 = vector.broadcast %247 : f32 to vector<1x256xf32>
    %249 = arith.mulf %246, %248 : vector<1x256xf32>
    %250 = arith.addf %244, %249 : vector<1x256xf32>
    %251 = vector.extract_strided_slice %230 {offsets = [0, 3, 0], sizes = [1, 1, 256], strides = [1, 1, 1]} : vector<1x4x256xf32> to vector<1x1x256xf32>
    %252 = vector.shape_cast %251 : vector<1x1x256xf32> to vector<1x256xf32>
    %c0_82 = arith.constant 0 : index
    %c3_83 = arith.constant 3 : index
    %253 = memref.load %arg10[%c0_82, %c3_83] : memref<2x4xf32, #tpu.memory_space<smem>>
    %254 = vector.broadcast %253 : f32 to vector<1x256xf32>
    %255 = arith.mulf %252, %254 : vector<1x256xf32>
    %256 = arith.addf %250, %255 : vector<1x256xf32>
    %257 = vector.extract_strided_slice %230 {offsets = [0, 0, 0], sizes = [1, 1, 256], strides = [1, 1, 1]} : vector<1x4x256xf32> to vector<1x1x256xf32>
    %258 = vector.shape_cast %257 : vector<1x1x256xf32> to vector<1x256xf32>
    %c1_84 = arith.constant 1 : index
    %c0_85 = arith.constant 0 : index
    %259 = memref.load %arg10[%c1_84, %c0_85] : memref<2x4xf32, #tpu.memory_space<smem>>
    %260 = vector.broadcast %259 : f32 to vector<1x256xf32>
    %261 = arith.mulf %258, %260 : vector<1x256xf32>
    %c1_86 = arith.constant 1 : index
    %262 = memref.load %arg11[%c1_86] : memref<2xf32, #tpu.memory_space<smem>>
    %263 = vector.broadcast %262 : f32 to vector<1x256xf32>
    %264 = arith.addf %261, %263 : vector<1x256xf32>
    %265 = vector.extract_strided_slice %230 {offsets = [0, 1, 0], sizes = [1, 1, 256], strides = [1, 1, 1]} : vector<1x4x256xf32> to vector<1x1x256xf32>
    %266 = vector.shape_cast %265 : vector<1x1x256xf32> to vector<1x256xf32>
    %c1_87 = arith.constant 1 : index
    %c1_88 = arith.constant 1 : index
    %267 = memref.load %arg10[%c1_87, %c1_88] : memref<2x4xf32, #tpu.memory_space<smem>>
    %268 = vector.broadcast %267 : f32 to vector<1x256xf32>
    %269 = arith.mulf %266, %268 : vector<1x256xf32>
    %270 = arith.addf %264, %269 : vector<1x256xf32>
    %271 = vector.extract_strided_slice %230 {offsets = [0, 2, 0], sizes = [1, 1, 256], strides = [1, 1, 1]} : vector<1x4x256xf32> to vector<1x1x256xf32>
    %272 = vector.shape_cast %271 : vector<1x1x256xf32> to vector<1x256xf32>
    %c1_89 = arith.constant 1 : index
    %c2_90 = arith.constant 2 : index
    %273 = memref.load %arg10[%c1_89, %c2_90] : memref<2x4xf32, #tpu.memory_space<smem>>
    %274 = vector.broadcast %273 : f32 to vector<1x256xf32>
    %275 = arith.mulf %272, %274 : vector<1x256xf32>
    %276 = arith.addf %270, %275 : vector<1x256xf32>
    %277 = vector.extract_strided_slice %230 {offsets = [0, 3, 0], sizes = [1, 1, 256], strides = [1, 1, 1]} : vector<1x4x256xf32> to vector<1x1x256xf32>
    %278 = vector.shape_cast %277 : vector<1x1x256xf32> to vector<1x256xf32>
    %c1_91 = arith.constant 1 : index
    %c3_92 = arith.constant 3 : index
    %279 = memref.load %arg10[%c1_91, %c3_92] : memref<2x4xf32, #tpu.memory_space<smem>>
    %280 = vector.broadcast %279 : f32 to vector<1x256xf32>
    %281 = arith.mulf %278, %280 : vector<1x256xf32>
    %282 = arith.addf %276, %281 : vector<1x256xf32>
    %283 = vector.shape_cast %256 : vector<1x256xf32> to vector<1x1x256xf32>
    %284 = vector.shape_cast %282 : vector<1x256xf32> to vector<1x1x256xf32>
    %285 = tpu.concatenate %283, %284 in 1 : vector<1x1x256xf32>, vector<1x1x256xf32> -> vector<1x2x256xf32>
    %cst_93 = arith.constant dense<0.000000e+00> : vector<1x2xf32>
    %286 = vector.multi_reduction <add>, %285, %cst_93 [2] : vector<1x2x256xf32> to vector<1x2xf32>
    %287 = vector.shape_cast %286 : vector<1x2xf32> to vector<1x2x1xf32>
    %cst_94 = arith.constant 2.560000e+02 : f32
    %288 = vector.broadcast %cst_94 : f32 to vector<1x2x1xf32>
    %289 = arith.divf %287, %288 : vector<1x2x1xf32>
    %290 = vector.broadcast %289 : vector<1x2x1xf32> to vector<1x2x256xf32>
    %291 = arith.subf %285, %290 : vector<1x2x256xf32>
    %292 = arith.mulf %291, %291 : vector<1x2x256xf32>
    %cst_95 = arith.constant dense<0.000000e+00> : vector<1x2xf32>
    %293 = vector.multi_reduction <add>, %292, %cst_95 [2] : vector<1x2x256xf32> to vector<1x2xf32>
    %294 = vector.shape_cast %293 : vector<1x2xf32> to vector<1x2x1xf32>
    %cst_96 = arith.constant 2.560000e+02 : f32
    %295 = vector.broadcast %cst_96 : f32 to vector<1x2x1xf32>
    %296 = arith.divf %294, %295 : vector<1x2x1xf32>
    %297 = vector.broadcast %289 : vector<1x2x1xf32> to vector<1x2x256xf32>
    %298 = arith.subf %285, %297 : vector<1x2x256xf32>
    %cst_97 = arith.constant 9.99999974E-6 : f32
    %299 = vector.broadcast %cst_97 : f32 to vector<1x2x1xf32>
    %300 = arith.addf %296, %299 : vector<1x2x1xf32>
    %301 = math.rsqrt %300 : vector<1x2x1xf32>
    %302 = vector.broadcast %301 : vector<1x2x1xf32> to vector<1x2x256xf32>
    %303 = arith.mulf %298, %302 : vector<1x2x256xf32>
    %304 = arith.negf %303 : vector<1x2x256xf32>
    %305 = math.exp %304 : vector<1x2x256xf32>
    %cst_98 = arith.constant 1.000000e+00 : f32
    %306 = vector.broadcast %cst_98 : f32 to vector<1x2x256xf32>
    %307 = arith.addf %306, %305 : vector<1x2x256xf32>
    %308 = arith.divf %306, %307 : vector<1x2x256xf32>
    %309 = arith.mulf %303, %308 : vector<1x2x256xf32>
    %c0_99 = arith.constant 0 : index
    %310 = memref.load %arg12[%c0_99] : memref<1xf32, #tpu.memory_space<smem>>
    %311 = vector.broadcast %310 : f32 to vector<1x2x256xf32>
    %312 = arith.mulf %311, %309 : vector<1x2x256xf32>
    %313 = arith.addf %89, %312 : vector<1x2x256xf32>
    %c0_100 = arith.constant 0 : index
    %c0_101 = arith.constant 0 : index
    %c0_102 = arith.constant 0 : index
    %314 = vector.load %arg13[%c0_100, %c0_101, %c0_102] : memref<1x2x256xf32, #tpu.memory_space<vmem>>, vector<1x2x256xf32>
    tpu.vector_store %arg13[%c0_100, %c0_101, %c0_102], %313 {strides = array<i32>} : memref<1x2x256xf32, #tpu.memory_space<vmem>>, vector<1x2x256xf32>,
    return
  }
  func.func @transform_0(%arg0: i32) -> (i32, i32, i32) {
    %c0_i32 = arith.constant 0 : i32
    %c0_i32_0 = arith.constant 0 : i32
    %c0_i32_1 = arith.constant 0 : i32
    return %arg0, %c0_i32, %c0_i32_0 : i32, i32, i32
  }
  func.func @transform_1(%arg0: i32) -> (i32, i32, i32) {
    %c0_i32 = arith.constant 0 : i32
    %c0_i32_0 = arith.constant 0 : i32
    %c0_i32_1 = arith.constant 0 : i32
    return %arg0, %c0_i32, %c0_i32_0 : i32, i32, i32
  }
  func.func @transform_2(%arg0: i32) -> (i32, i32, i32) {
    %c0_i32 = arith.constant 0 : i32
    %c0_i32_0 = arith.constant 0 : i32
    %c0_i32_1 = arith.constant 0 : i32
    return %arg0, %c0_i32, %c0_i32_0 : i32, i32, i32
  }
  func.func @transform_3(%arg0: i32) -> (i32, i32) {
    %c0_i32 = arith.constant 0 : i32
    %c0_i32_0 = arith.constant 0 : i32
    %c0_i32_1 = arith.constant 0 : i32
    return %c0_i32, %c0_i32_0 : i32, i32
  }
  func.func @transform_4(%arg0: i32) -> i32 {
    %c0_i32 = arith.constant 0 : i32
    %c0_i32_0 = arith.constant 0 : i32
    return %c0_i32 : i32
  }
  func.func @transform_5(%arg0: i32) -> (i32, i32) {
    %c0_i32 = arith.constant 0 : i32
    %c0_i32_0 = arith.constant 0 : i32
    %c0_i32_1 = arith.constant 0 : i32
    return %c0_i32, %c0_i32_0 : i32, i32
  }
  func.func @transform_6(%arg0: i32) -> i32 {
    %c0_i32 = arith.constant 0 : i32
    %c0_i32_0 = arith.constant 0 : i32
    return %c0_i32 : i32
  }
  func.func @transform_7(%arg0: i32) -> (i32, i32) {
    %c0_i32 = arith.constant 0 : i32
    %c0_i32_0 = arith.constant 0 : i32
    %c0_i32_1 = arith.constant 0 : i32
    return %c0_i32, %c0_i32_0 : i32, i32
  }
  func.func @transform_8(%arg0: i32) -> i32 {
    %c0_i32 = arith.constant 0 : i32
    %c0_i32_0 = arith.constant 0 : i32
    return %c0_i32 : i32
  }
  func.func @transform_9(%arg0: i32) -> (i32, i32) {
    %c0_i32 = arith.constant 0 : i32
    %c0_i32_0 = arith.constant 0 : i32
    %c0_i32_1 = arith.constant 0 : i32
    return %c0_i32, %c0_i32_0 : i32, i32
  }
  func.func @transform_10(%arg0: i32) -> i32 {
    %c0_i32 = arith.constant 0 : i32
    %c0_i32_0 = arith.constant 0 : i32
    return %c0_i32 : i32
  }
  func.func @transform_11(%arg0: i32) -> i32 {
    %c0_i32 = arith.constant 0 : i32
    %c0_i32_0 = arith.constant 0 : i32
    return %c0_i32 : i32
  }
  func.func @transform_12(%arg0: i32) -> (i32, i32, i32) {
    %c0_i32 = arith.constant 0 : i32
    %c0_i32_0 = arith.constant 0 : i32
    %c0_i32_1 = arith.constant 0 : i32
    return %arg0, %c0_i32, %c0_i32_0 : i32, i32, i32
  }
}

</mosaic_0001>

<llo_original>
// kernel: final_layer_forward.1
$region0: #{final_layer_forward.1}
  #allocation0 [shape = 'u32[]', space=smem, size = 0x4, offset = 0x4, fixed_abs, tag = 'smem constant byte address 0x4 - core index']
  #allocation1 [shape = 'u32[144,128]{1,0:T(1,128)}', space=vmem, size = 0x12000, scoped, tag = 'internal scratch']
  #allocation2 [shape = 'f32[1]{0:T(128)S(6)}', space=smem, size = 0x200, scoped, tag = 'scoped memory for final_layer_forward.1']
  #allocation3 [shape = 'f32[1]{0:T(128)S(6)}', space=smem, size = 0x200, scoped, tag = 'scoped memory for final_layer_forward.1']
  %s0 = inlined_call_operand.vmem [shape: f32[2,4,256], index: 0, kind: input, shape index: {}]
  %s1 = inlined_call_operand.vmem [shape: f32[2,4,1], index: 1, kind: input, shape index: {}]
  %s2 = inlined_call_operand.vmem [shape: f32[2,4,1], index: 2, kind: input, shape index: {}]
  %s3 = inlined_call_operand.vmem [shape: f32[2,4], index: 3, kind: input, shape index: {}]
  %s4 = inlined_call_operand.vmem [shape: f32[2], index: 4, kind: input, shape index: {}]
  %s5 = inlined_call_operand.vmem [shape: f32[1,4], index: 5, kind: input, shape index: {}]
  %s6 = inlined_call_operand.<no memory space> [shape: f32[1], index: 6, kind: input, shape index: {}]
  %s7 = inlined_call_operand.vmem [shape: f32[4,4], index: 7, kind: input, shape index: {}]
  %s8 = inlined_call_operand.vmem [shape: f32[4], index: 8, kind: input, shape index: {}]
  %s9 = inlined_call_operand.vmem [shape: f32[2,4], index: 9, kind: input, shape index: {}]
  %s10 = inlined_call_operand.vmem [shape: f32[2], index: 10, kind: input, shape index: {}]
  %s11 = inlined_call_operand.<no memory space> [shape: f32[1], index: 11, kind: input, shape index: {}]
  %s12 = inlined_call_operand.vmem [shape: f32[2,2,256], index: 12, kind: output, shape index: {}]
  %s13 = sld [smem:[#allocation0]]
  $region109: #{final_layer_forward.1} parent=0
    _
  %s15 = ssub.s32 1, %s13
  %s16 = scalar_select 0, %s15, %s13
  %17 = sst [smem:[#allocation2]] %s6
  %18 = sst [smem:[#allocation3]] %s11
  $region1: #{final_layer_forward.1} parent=0
    #allocation4 [shape = 'u8[1024]{0}', space=smem, size = 0x400, scoped, tag = 'input window, operand 3, single buffered']
    #allocation5 [shape = 's32[2]{0}', space=sflag, size = 0x8, scoped, tag = 'scoped memory for final_layer_forward.1']
    #allocation6 [shape = 'u8[512]{0}', space=smem, size = 0x200, scoped, tag = 'input window, operand 4, single buffered']
    #allocation7 [shape = 's32[1]{0}', space=sflag, size = 0x4, scoped, tag = 'scoped memory for final_layer_forward.1']
    #allocation8 [shape = 'u8[512]{0}', space=smem, size = 0x200, scoped, tag = 'input window, operand 5, single buffered']
    #allocation9 [shape = 'u8[2048]{0}', space=smem, size = 0x800, scoped, tag = 'input window, operand 7, single buffered']
    #allocation10 [shape = 's32[1]{0}', space=sflag, size = 0x4, scoped, tag = 'scoped memory for final_layer_forward.1']
    #allocation11 [shape = 'u8[512]{0}', space=smem, size = 0x200, scoped, tag = 'input window, operand 8, single buffered']
    #allocation12 [shape = 'u8[1024]{0}', space=smem, size = 0x400, scoped, tag = 'input window, operand 9, single buffered']
    #allocation13 [shape = 's32[1]{0}', space=sflag, size = 0x4, scoped, tag = 'scoped memory for final_layer_forward.1']
    #allocation14 [shape = 'u8[512]{0}', space=smem, size = 0x200, scoped, tag = 'input window, operand 10, single buffered']
    %19 = vsyncpa [#allocation5], 0
    %20 = vsyncpa [#allocation7], 0
    %21 = vsyncpa [#allocation10], 0
    %22 = vsyncpa [#allocation13], 0
    loop: start=0, step=1, limit=4
    $region2: #{final_layer_forward.1} parent=1 // loop_pre_header
      _
    $region3: #{final_layer_forward.1} parent=1 // loop_header
      %s24 = sphi 0, %s28
      %p25 = scmp.ge.s32.totalorder %s24, 4
      %s34 = sphi 0, %s36
      %s37 = sphi 0, %s34
      %s38 = sphi 0, %s37
      %s54 = sphi 0, %s38
      %s60 = sphi 0, %s62
      %s63 = sphi 0, %s60
      %s64 = sphi 0, %s63
      %s80 = sphi 0, %s64
      %s86 = sphi 0, %s88
      %s89 = sphi 0, %s86
      %s90 = sphi 0, %s89
      %s106 = sphi 0, %s90
      %s110 = sphi 0, %s110
      %s112 = sphi 0, %s110
      %s113 = sphi 0, %s112
      %s127 = sphi 0, %s113
      %s131 = sphi 0, %s131
      %s133 = sphi 0, %s131
      %s134 = sphi 0, %s133
      %s148 = sphi 0, %s134
      %s152 = sphi 0, %s152
      %s154 = sphi 0, %s152
      %s155 = sphi 0, %s154
      %s169 = sphi 0, %s155
      %s173 = sphi 0, %s173
      %s175 = sphi 0, %s173
      %s176 = sphi 0, %s175
      %s190 = sphi 0, %s176
      %s194 = sphi 0, %s194
      %s196 = sphi 0, %s194
      %s197 = sphi 0, %s196
      %s211 = sphi 0, %s197
      %s215 = sphi 0, %s215
      %s217 = sphi 0, %s215
      %s218 = sphi 0, %s217
      %s232 = sphi 0, %s218
      %s236 = sphi 0, %s236
      %s238 = sphi 0, %s236
      %s239 = sphi 0, %s238
      %s253 = sphi 0, %s239
      %s257 = sphi 0, %s257
      %s259 = sphi 0, %s257
      %s260 = sphi 0, %s259
      %s274 = sphi 0, %s260
      %s278 = sphi 0, %s278
      %s280 = sphi 0, %s278
      %s281 = sphi 0, %s280
      %s295 = sphi 0, %s281
      %s301 = sphi 0, %s303
      %s304 = sphi 0, %s301
      %s305 = sphi 0, %s304
      %s321 = sphi 0, %s305
    $region4: #{final_layer_forward.1} parent=1 // loop_header_branch
      %27 = sbr.rel (%p25) target = $region8
    $region5: #{final_layer_forward.1} parent=1 // loop_body
      %s29 = ssub.s32 %s24, 1
      %s30 = ssub.s32 %s24, 2
      %s31 = sadd.s32 %s24, 1
      %s32 = ssub.s32 %s24, %s31
      %p33 = scmp.eq.s32.totalorder %s32, 0
      %s35 = sadd.s32 %s34, 1
      %s36 = scalar_select %p33, %s34, %s35
      %p39 = pneg %p33
      %p40 = scmp.eq.s32.totalorder %s24, 1
      %p41 = por %p39, %p40
      %p42 = scmp.ne.s32.totalorder %s34, %s37
      %p43 = scmp.eq.s32.totalorder %s24, 0
      %p44 = por %p42, %p43
      %p45 = scmp.ne.s32.totalorder %s34, %s37
      %p46 = scmp.eq.s32.totalorder %s29, 1
      %p47 = por %p45, %p46
      %p48 = scmp.ne.s32.totalorder %s37, %s38
      %p49 = scmp.eq.s32.totalorder %s29, 0
      %p50 = por %p48, %p49
      %p51 = scmp.ne.s32.totalorder %s37, %s38
      %p52 = scmp.eq.s32.totalorder %s30, 1
      %p53 = por %p51, %p52
      %p55 = scmp.ne.s32.totalorder %s38, %s54
      %p56 = scmp.eq.s32.totalorder %s30, 0
      %p57 = por %p55, %p56
      %s58 = ssub.s32 %s24, %s31
      %p59 = scmp.eq.s32.totalorder %s58, 0
      %s61 = sadd.s32 %s60, 1
      %s62 = scalar_select %p59, %s60, %s61
      %p65 = pneg %p59
      %p66 = scmp.eq.s32.totalorder %s24, 1
      %p67 = por %p65, %p66
      %p68 = scmp.ne.s32.totalorder %s60, %s63
      %p69 = scmp.eq.s32.totalorder %s24, 0
      %p70 = por %p68, %p69
      %p71 = scmp.ne.s32.totalorder %s60, %s63
      %p72 = scmp.eq.s32.totalorder %s29, 1
      %p73 = por %p71, %p72
      %p74 = scmp.ne.s32.totalorder %s63, %s64
      %p75 = scmp.eq.s32.totalorder %s29, 0
      %p76 = por %p74, %p75
      %p77 = scmp.ne.s32.totalorder %s63, %s64
      %p78 = scmp.eq.s32.totalorder %s30, 1
      %p79 = por %p77, %p78
      %p81 = scmp.ne.s32.totalorder %s64, %s80
      %p82 = scmp.eq.s32.totalorder %s30, 0
      %p83 = por %p81, %p82
      %s84 = ssub.s32 %s24, %s31
      %p85 = scmp.eq.s32.totalorder %s84, 0
      %s87 = sadd.s32 %s86, 1
      %s88 = scalar_select %p85, %s86, %s87
      %p91 = pneg %p85
      %p92 = scmp.eq.s32.totalorder %s24, 1
      %p93 = por %p91, %p92
      %p94 = scmp.ne.s32.totalorder %s86, %s89
      %p95 = scmp.eq.s32.totalorder %s24, 0
      %p96 = por %p94, %p95
      %p97 = scmp.ne.s32.totalorder %s86, %s89
      %p98 = scmp.eq.s32.totalorder %s29, 1
      %p99 = por %p97, %p98
      %p100 = scmp.ne.s32.totalorder %s89, %s90
      %p101 = scmp.eq.s32.totalorder %s29, 0
      %p102 = por %p100, %p101
      %p103 = scmp.ne.s32.totalorder %s89, %s90
      %p104 = scmp.eq.s32.totalorder %s30, 1
      %p105 = por %p103, %p104
      %p107 = scmp.ne.s32.totalorder %s90, %s106
      %p108 = scmp.eq.s32.totalorder %s30, 0
      %p109 = por %p107, %p108
      %s111 = sadd.s32 %s110, 1
      %p114 = scmp.eq.s32.totalorder %s24, 1
      %p115 = scmp.ne.s32.totalorder %s110, %s112
      %p116 = scmp.eq.s32.totalorder %s24, 0
      %p117 = por %p115, %p116
      %p118 = scmp.ne.s32.totalorder %s110, %s112
      %p119 = scmp.eq.s32.totalorder %s29, 1
      %p120 = por %p118, %p119
      %p121 = scmp.ne.s32.totalorder %s112, %s113
      %p122 = scmp.eq.s32.totalorder %s29, 0
      %p123 = por %p121, %p122
      %p124 = scmp.ne.s32.totalorder %s112, %s113
      %p125 = scmp.eq.s32.totalorder %s30, 1
      %p126 = por %p124, %p125
      %p128 = scmp.ne.s32.totalorder %s113, %s127
      %p129 = scmp.eq.s32.totalorder %s30, 0
      %p130 = por %p128, %p129
      %s132 = sadd.s32 %s131, 1
      %p135 = scmp.eq.s32.totalorder %s24, 1
      %p136 = scmp.ne.s32.totalorder %s131, %s133
      %p137 = scmp.eq.s32.totalorder %s24, 0
      %p138 = por %p136, %p137
      %p139 = scmp.ne.s32.totalorder %s131, %s133
      %p140 = scmp.eq.s32.totalorder %s29, 1
      %p141 = por %p139, %p140
      %p142 = scmp.ne.s32.totalorder %s133, %s134
      %p143 = scmp.eq.s32.totalorder %s29, 0
      %p144 = por %p142, %p143
      %p145 = scmp.ne.s32.totalorder %s133, %s134
      %p146 = scmp.eq.s32.totalorder %s30, 1
      %p147 = por %p145, %p146
      %p149 = scmp.ne.s32.totalorder %s134, %s148
      %p150 = scmp.eq.s32.totalorder %s30, 0
      %p151 = por %p149, %p150
      %s153 = sadd.s32 %s152, 1
      %p156 = scmp.eq.s32.totalorder %s24, 1
      %p157 = scmp.ne.s32.totalorder %s152, %s154
      %p158 = scmp.eq.s32.totalorder %s24, 0
      %p159 = por %p157, %p158
      %p160 = scmp.ne.s32.totalorder %s152, %s154
      %p161 = scmp.eq.s32.totalorder %s29, 1
      %p162 = por %p160, %p161
      %p163 = scmp.ne.s32.totalorder %s154, %s155
      %p164 = scmp.eq.s32.totalorder %s29, 0
      %p165 = por %p163, %p164
      %p166 = scmp.ne.s32.totalorder %s154, %s155
      %p167 = scmp.eq.s32.totalorder %s30, 1
      %p168 = por %p166, %p167
      %p170 = scmp.ne.s32.totalorder %s155, %s169
      %p171 = scmp.eq.s32.totalorder %s30, 0
      %p172 = por %p170, %p171
      %s174 = sadd.s32 %s173, 1
      %p177 = scmp.eq.s32.totalorder %s24, 1
      %p178 = scmp.ne.s32.totalorder %s173, %s175
      %p179 = scmp.eq.s32.totalorder %s24, 0
      %p180 = por %p178, %p179
      %p181 = scmp.ne.s32.totalorder %s173, %s175
      %p182 = scmp.eq.s32.totalorder %s29, 1
      %p183 = por %p181, %p182
      %p184 = scmp.ne.s32.totalorder %s175, %s176
      %p185 = scmp.eq.s32.totalorder %s29, 0
      %p186 = por %p184, %p185
      %p187 = scmp.ne.s32.totalorder %s175, %s176
      %p188 = scmp.eq.s32.totalorder %s30, 1
      %p189 = por %p187, %p188
      %p191 = scmp.ne.s32.totalorder %s176, %s190
      %p192 = scmp.eq.s32.totalorder %s30, 0
      %p193 = por %p191, %p192
      %s195 = sadd.s32 %s194, 1
      %p198 = scmp.eq.s32.totalorder %s24, 1
      %p199 = scmp.ne.s32.totalorder %s194, %s196
      %p200 = scmp.eq.s32.totalorder %s24, 0
      %p201 = por %p199, %p200
      %p202 = scmp.ne.s32.totalorder %s194, %s196
      %p203 = scmp.eq.s32.totalorder %s29, 1
      %p204 = por %p202, %p203
      %p205 = scmp.ne.s32.totalorder %s196, %s197
      %p206 = scmp.eq.s32.totalorder %s29, 0
      %p207 = por %p205, %p206
      %p208 = scmp.ne.s32.totalorder %s196, %s197
      %p209 = scmp.eq.s32.totalorder %s30, 1
      %p210 = por %p208, %p209
      %p212 = scmp.ne.s32.totalorder %s197, %s211
      %p213 = scmp.eq.s32.totalorder %s30, 0
      %p214 = por %p212, %p213
      %s216 = sadd.s32 %s215, 1
      %p219 = scmp.eq.s32.totalorder %s24, 1
      %p220 = scmp.ne.s32.totalorder %s215, %s217
      %p221 = scmp.eq.s32.totalorder %s24, 0
      %p222 = por %p220, %p221
      %p223 = scmp.ne.s32.totalorder %s215, %s217
      %p224 = scmp.eq.s32.totalorder %s29, 1
      %p225 = por %p223, %p224
      %p226 = scmp.ne.s32.totalorder %s217, %s218
      %p227 = scmp.eq.s32.totalorder %s29, 0
      %p228 = por %p226, %p227
      %p229 = scmp.ne.s32.totalorder %s217, %s218
      %p230 = scmp.eq.s32.totalorder %s30, 1
      %p231 = por %p229, %p230
      %p233 = scmp.ne.s32.totalorder %s218, %s232
      %p234 = scmp.eq.s32.totalorder %s30, 0
      %p235 = por %p233, %p234
      %s237 = sadd.s32 %s236, 1
      %p240 = scmp.eq.s32.totalorder %s24, 1
      %p241 = scmp.ne.s32.totalorder %s236, %s238
      %p242 = scmp.eq.s32.totalorder %s24, 0
      %p243 = por %p241, %p242
      %p244 = scmp.ne.s32.totalorder %s236, %s238
      %p245 = scmp.eq.s32.totalorder %s29, 1
      %p246 = por %p244, %p245
      %p247 = scmp.ne.s32.totalorder %s238, %s239
      %p248 = scmp.eq.s32.totalorder %s29, 0
      %p249 = por %p247, %p248
      %p250 = scmp.ne.s32.totalorder %s238, %s239
      %p251 = scmp.eq.s32.totalorder %s30, 1
      %p252 = por %p250, %p251
      %p254 = scmp.ne.s32.totalorder %s239, %s253
      %p255 = scmp.eq.s32.totalorder %s30, 0
      %p256 = por %p254, %p255
      %s258 = sadd.s32 %s257, 1
      %p261 = scmp.eq.s32.totalorder %s24, 1
      %p262 = scmp.ne.s32.totalorder %s257, %s259
      %p263 = scmp.eq.s32.totalorder %s24, 0
      %p264 = por %p262, %p263
      %p265 = scmp.ne.s32.totalorder %s257, %s259
      %p266 = scmp.eq.s32.totalorder %s29, 1
      %p267 = por %p265, %p266
      %p268 = scmp.ne.s32.totalorder %s259, %s260
      %p269 = scmp.eq.s32.totalorder %s29, 0
      %p270 = por %p268, %p269
      %p271 = scmp.ne.s32.totalorder %s259, %s260
      %p272 = scmp.eq.s32.totalorder %s30, 1
      %p273 = por %p271, %p272
      %p275 = scmp.ne.s32.totalorder %s260, %s274
      %p276 = scmp.eq.s32.totalorder %s30, 0
      %p277 = por %p275, %p276
      %s279 = sadd.s32 %s278, 1
      %p282 = scmp.eq.s32.totalorder %s24, 1
      %p283 = scmp.ne.s32.totalorder %s278, %s280
      %p284 = scmp.eq.s32.totalorder %s24, 0
      %p285 = por %p283, %p284
      %p286 = scmp.ne.s32.totalorder %s278, %s280
      %p287 = scmp.eq.s32.totalorder %s29, 1
      %p288 = por %p286, %p287
      %p289 = scmp.ne.s32.totalorder %s280, %s281
      %p290 = scmp.eq.s32.totalorder %s29, 0
      %p291 = por %p289, %p290
      %p292 = scmp.ne.s32.totalorder %s280, %s281
      %p293 = scmp.eq.s32.totalorder %s30, 1
      %p294 = por %p292, %p293
      %p296 = scmp.ne.s32.totalorder %s281, %s295
      %p297 = scmp.eq.s32.totalorder %s30, 0
      %p298 = por %p296, %p297
      %s299 = ssub.s32 %s24, %s31
      %p300 = scmp.eq.s32.totalorder %s299, 0
      %s302 = sadd.s32 %s301, 1
      %s303 = scalar_select %p300, %s301, %s302
      %p306 = pneg %p300
      %p307 = scmp.eq.s32.totalorder %s24, 1
      %p308 = por %p306, %p307
      %p309 = scmp.ne.s32.totalorder %s301, %s304
      %p310 = scmp.eq.s32.totalorder %s24, 0
      %p311 = por %p309, %p310
      %p312 = scmp.ne.s32.totalorder %s301, %s304
      %p313 = scmp.eq.s32.totalorder %s29, 1
      %p314 = por %p312, %p313
      %p315 = scmp.ne.s32.totalorder %s304, %s305
      %p316 = scmp.eq.s32.totalorder %s29, 0
      %p317 = por %p315, %p316
      %p318 = scmp.ne.s32.totalorder %s304, %s305
      %p319 = scmp.eq.s32.totalorder %s30, 1
      %p320 = por %p318, %p319
      %p322 = scmp.ne.s32.totalorder %s305, %s321
      %p323 = scmp.eq.s32.totalorder %s30, 0
      %p324 = por %p322, %p323
      %p325 = scmp.le.s32.totalorder 1, %s24
      %p326 = scmp.lt.s32.totalorder %s24, 3
      %p327 = pnand %p325, %p326
      %p328 = pneg %p327
      // Predicated region
      $region9: #{final_layer_forward.1} parent=5 // pred_check
        _
      $region10: #{final_layer_forward.1} parent=5 // pred_check_branch
        %330 = sbr.rel (%p327) target = $region12
      $region11: #{final_layer_forward.1} parent=5 // pred_region
        %s331 = ssub.s32 %s24, 1
        // Predicated region
        $region13: #{final_layer_forward.1} parent=11 // pred_check
          %p332 = pneg %p123
        $region14: #{final_layer_forward.1} parent=11 // pred_check_branch
          %334 = sbr.rel (%p332) target = $region16
        $region15: #{final_layer_forward.1} parent=11 // pred_region
          %s336 = ssub.s32 32, 32
          %337 = vsyncadd [#allocation5], %s336
          %s339 = sshll.u32 %s3, 4
          %s340 = int_to_ptr.vmem [resolvable:$true] %s339
          %342 = dma.vmem_to_smem %s340, 32, [#allocation4], [#allocation5]
        $region16: #{final_layer_forward.1} parent=11 // pred_fallthru
          _
        // Predicated region
        $region17: #{final_layer_forward.1} parent=11 // pred_check
          %p343 = pneg %p144
        $region18: #{final_layer_forward.1} parent=11 // pred_check_branch
          %345 = sbr.rel (%p343) target = $region20
        $region19: #{final_layer_forward.1} parent=11 // pred_region
          %s347 = ssub.s32 16, 16
          %348 = vsyncadd [#allocation7], %s347
          %s350 = sshll.u32 %s4, 4
          %s351 = int_to_ptr.vmem [resolvable:$true] %s350
          %353 = dma.vmem_to_smem %s351, 16, [#allocation6], [#allocation7]
        $region20: #{final_layer_forward.1} parent=11 // pred_fallthru
          _
        // Predicated region
        $region21: #{final_layer_forward.1} parent=11 // pred_check
          %p354 = pneg %p165
        $region22: #{final_layer_forward.1} parent=11 // pred_check_branch
          %356 = sbr.rel (%p354) target = $region24
        $region23: #{final_layer_forward.1} parent=11 // pred_region
          %s358 = ssub.s32 16, 16
          %359 = vsyncadd [#allocation7], %s358
          %s361 = sshll.u32 %s5, 4
          %s362 = int_to_ptr.vmem [resolvable:$true] %s361
          %364 = dma.vmem_to_smem %s362, 16, [#allocation8], [#allocation7]
        $region24: #{final_layer_forward.1} parent=11 // pred_fallthru
          _
        // Predicated region
        $region25: #{final_layer_forward.1} parent=11 // pred_check
          %p365 = pneg %p186
        $region26: #{final_layer_forward.1} parent=11 // pred_check_branch
          %367 = sbr.rel (%p365) target = $region28
        $region27: #{final_layer_forward.1} parent=11 // pred_region
          _
        $region28: #{final_layer_forward.1} parent=11 // pred_fallthru
          _
        // Predicated region
        $region29: #{final_layer_forward.1} parent=11 // pred_check
          %p368 = pneg %p207
        $region30: #{final_layer_forward.1} parent=11 // pred_check_branch
          %370 = sbr.rel (%p368) target = $region32
        $region31: #{final_layer_forward.1} parent=11 // pred_region
          %s372 = ssub.s32 64, 64
          %373 = vsyncadd [#allocation10], %s372
          %s375 = sshll.u32 %s7, 4
          %s376 = int_to_ptr.vmem [resolvable:$true] %s375
          %378 = dma.vmem_to_smem %s376, 64, [#allocation9], [#allocation10]
        $region32: #{final_layer_forward.1} parent=11 // pred_fallthru
          _
        // Predicated region
        $region33: #{final_layer_forward.1} parent=11 // pred_check
          %p379 = pneg %p228
        $region34: #{final_layer_forward.1} parent=11 // pred_check_branch
          %381 = sbr.rel (%p379) target = $region36
        $region35: #{final_layer_forward.1} parent=11 // pred_region
          %s383 = ssub.s32 16, 16
          %384 = vsyncadd [#allocation10], %s383
          %s386 = sshll.u32 %s8, 4
          %s387 = int_to_ptr.vmem [resolvable:$true] %s386
          %389 = dma.vmem_to_smem %s387, 16, [#allocation11], [#allocation10]
        $region36: #{final_layer_forward.1} parent=11 // pred_fallthru
          _
        // Predicated region
        $region37: #{final_layer_forward.1} parent=11 // pred_check
          %p390 = pneg %p249
        $region38: #{final_layer_forward.1} parent=11 // pred_check_branch
          %392 = sbr.rel (%p390) target = $region40
        $region39: #{final_layer_forward.1} parent=11 // pred_region
          %s394 = ssub.s32 32, 32
          %395 = vsyncadd [#allocation13], %s394
          %s397 = sshll.u32 %s9, 4
          %s398 = int_to_ptr.vmem [resolvable:$true] %s397
          %400 = dma.vmem_to_smem %s398, 32, [#allocation12], [#allocation13]
        $region40: #{final_layer_forward.1} parent=11 // pred_fallthru
          _
        // Predicated region
        $region41: #{final_layer_forward.1} parent=11 // pred_check
          %p401 = pneg %p270
        $region42: #{final_layer_forward.1} parent=11 // pred_check_branch
          %403 = sbr.rel (%p401) target = $region44
        $region43: #{final_layer_forward.1} parent=11 // pred_region
          %s405 = ssub.s32 16, 16
          %406 = vsyncadd [#allocation13], %s405
          %s408 = sshll.u32 %s10, 4
          %s409 = int_to_ptr.vmem [resolvable:$true] %s408
          %411 = dma.vmem_to_smem %s409, 16, [#allocation14], [#allocation13]
        $region44: #{final_layer_forward.1} parent=11 // pred_fallthru
          _
        // Predicated region
        $region45: #{final_layer_forward.1} parent=11 // pred_check
          %p412 = pneg %p291
        $region46: #{final_layer_forward.1} parent=11 // pred_check_branch
          %414 = sbr.rel (%p412) target = $region48
        $region47: #{final_layer_forward.1} parent=11 // pred_region
          _
        $region48: #{final_layer_forward.1} parent=11 // pred_fallthru
          _
      $region12: #{final_layer_forward.1} parent=5 // pred_fallthru
        _
      %p415 = scmp.lt.s32.totalorder %s24, 2
      // Predicated region
      $region49: #{final_layer_forward.1} parent=5 // pred_check
        %p416 = pneg %p415
      $region50: #{final_layer_forward.1} parent=5 // pred_check_branch
        %418 = sbr.rel (%p416) target = $region52
      $region51: #{final_layer_forward.1} parent=5 // pred_region
        // Predicated region
        $region53: #{final_layer_forward.1} parent=51 // pred_check
          %p419 = pneg %p44
        $region54: #{final_layer_forward.1} parent=51 // pred_check_branch
          %421 = sbr.rel (%p419) target = $region56
        $region55: #{final_layer_forward.1} parent=51 // pred_region
          %p422 = scmp.lt.s32.totalorder %s24, 1
          %s423 = scalar_select %p422, %s24, 1
          %s424 = smul.addr %s423, 2
          %s425 = smul.addr %s424, 4
          %s426 = scalar_lea.vmem %s0, %s425
        $region56: #{final_layer_forward.1} parent=51 // pred_fallthru
          _
        // Predicated region
        $region57: #{final_layer_forward.1} parent=51 // pred_check
          %p427 = pneg %p70
        $region58: #{final_layer_forward.1} parent=51 // pred_check_branch
          %429 = sbr.rel (%p427) target = $region60
        $region59: #{final_layer_forward.1} parent=51 // pred_region
          %p430 = scmp.lt.s32.totalorder %s24, 1
          %s431 = scalar_select %p430, %s24, 1
          %s432 = smul.addr %s431, 4
          %s433 = scalar_lea.vmem %s1, %s432
        $region60: #{final_layer_forward.1} parent=51 // pred_fallthru
          _
        // Predicated region
        $region61: #{final_layer_forward.1} parent=51 // pred_check
          %p434 = pneg %p96
        $region62: #{final_layer_forward.1} parent=51 // pred_check_branch
          %436 = sbr.rel (%p434) target = $region64
        $region63: #{final_layer_forward.1} parent=51 // pred_region
          %p437 = scmp.lt.s32.totalorder %s24, 1
          %s438 = scalar_select %p437, %s24, 1
          %s439 = smul.addr %s438, 4
          %s440 = scalar_lea.vmem %s2, %s439
        $region64: #{final_layer_forward.1} parent=51 // pred_fallthru
          _
      $region52: #{final_layer_forward.1} parent=5 // pred_fallthru
        _
      %p441 = scmp.le.s32.totalorder 1, %s24
      %p442 = scmp.lt.s32.totalorder %s24, 3
      %p443 = pnand %p441, %p442
      %p444 = pneg %p443
      // Predicated region
      $region65: #{final_layer_forward.1} parent=5 // pred_check
        _
      $region66: #{final_layer_forward.1} parent=5 // pred_check_branch
        %446 = sbr.rel (%p443) target = $region68
      $region67: #{final_layer_forward.1} parent=5 // pred_region
        %s447 = ssub.s32 %s24, 1
        // Predicated region
        $region69: #{final_layer_forward.1} parent=67 // pred_check
          %p448 = pneg %p123
        $region70: #{final_layer_forward.1} parent=67 // pred_check_branch
          %450 = sbr.rel (%p448) target = $region72
        $region71: #{final_layer_forward.1} parent=67 // pred_region
          %451 = dma.done [#allocation5], 32
        $region72: #{final_layer_forward.1} parent=67 // pred_fallthru
          _
        // Predicated region
        $region73: #{final_layer_forward.1} parent=67 // pred_check
          %p452 = pneg %p144
        $region74: #{final_layer_forward.1} parent=67 // pred_check_branch
          %454 = sbr.rel (%p452) target = $region76
        $region75: #{final_layer_forward.1} parent=67 // pred_region
          %455 = dma.done [#allocation7], 16
        $region76: #{final_layer_forward.1} parent=67 // pred_fallthru
          _
        // Predicated region
        $region77: #{final_layer_forward.1} parent=67 // pred_check
          %p456 = pneg %p165
        $region78: #{final_layer_forward.1} parent=67 // pred_check_branch
          %458 = sbr.rel (%p456) target = $region80
        $region79: #{final_layer_forward.1} parent=67 // pred_region
          %459 = dma.done [#allocation7], 16
        $region80: #{final_layer_forward.1} parent=67 // pred_fallthru
          _
        // Predicated region
        $region81: #{final_layer_forward.1} parent=67 // pred_check
          %p460 = pneg %p207
        $region82: #{final_layer_forward.1} parent=67 // pred_check_branch
          %462 = sbr.rel (%p460) target = $region84
        $region83: #{final_layer_forward.1} parent=67 // pred_region
          %463 = dma.done [#allocation10], 64
        $region84: #{final_layer_forward.1} parent=67 // pred_fallthru
          _
        // Predicated region
        $region85: #{final_layer_forward.1} parent=67 // pred_check
          %p464 = pneg %p228
        $region86: #{final_layer_forward.1} parent=67 // pred_check_branch
          %466 = sbr.rel (%p464) target = $region88
        $region87: #{final_layer_forward.1} parent=67 // pred_region
          %467 = dma.done [#allocation10], 16
        $region88: #{final_layer_forward.1} parent=67 // pred_fallthru
          _
        // Predicated region
        $region89: #{final_layer_forward.1} parent=67 // pred_check
          %p468 = pneg %p249
        $region90: #{final_layer_forward.1} parent=67 // pred_check_branch
          %470 = sbr.rel (%p468) target = $region92
        $region91: #{final_layer_forward.1} parent=67 // pred_region
          %471 = dma.done [#allocation13], 32
        $region92: #{final_layer_forward.1} parent=67 // pred_fallthru
          _
        // Predicated region
        $region93: #{final_layer_forward.1} parent=67 // pred_check
          %p472 = pneg %p270
        $region94: #{final_layer_forward.1} parent=67 // pred_check_branch
          %474 = sbr.rel (%p472) target = $region96
        $region95: #{final_layer_forward.1} parent=67 // pred_region
          %475 = dma.done [#allocation13], 16
        $region96: #{final_layer_forward.1} parent=67 // pred_fallthru
          _
        %476 = sfence
        %p477 = scmp.lt.s32.totalorder %s29, 1
        %s478 = scalar_select %p477, %s29, 1
        %s479 = smul.addr %s478, 2
        %s480 = smul.addr %s479, 4
        %s481 = scalar_lea.vmem %s0, %s480
        %p482 = pneg %p50
        %p483 = pneg %p47
        %p484 = scmp.lt.s32.totalorder %s29, 1
        %s485 = scalar_select %p484, %s29, 1
        %s486 = smul.addr %s485, 4
        %s487 = scalar_lea.vmem %s1, %s486
        %p488 = pneg %p76
        %p489 = pneg %p73
        %p490 = scmp.lt.s32.totalorder %s29, 1
        %s491 = scalar_select %p490, %s29, 1
        %s492 = smul.addr %s491, 4
        %s493 = scalar_lea.vmem %s2, %s492
        %p494 = pneg %p102
        %p495 = pneg %p99
        %p496 = pneg %p123
        %p497 = pneg %p120
        %p498 = pneg %p144
        %p499 = pneg %p141
        %p500 = pneg %p165
        %p501 = pneg %p162
        %p502 = pneg %p186
        %p503 = pneg %p183
        %p504 = pneg %p207
        %p505 = pneg %p204
        %p506 = pneg %p228
        %p507 = pneg %p225
        %p508 = pneg %p249
        %p509 = pneg %p246
        %p510 = pneg %p270
        %p511 = pneg %p267
        %p512 = pneg %p291
        %p513 = pneg %p288
        %p514 = pneg %p317
        %p515 = pneg %p314
        %p516 = scmp.lt.s32.totalorder %s29, 1
        %s517 = scalar_select %p516, %s29, 1
        %s518 = smul.addr %s517, 2
        %s519 = smul.addr %s518, 2
        %s520 = scalar_lea.vmem %s12, %s519
        %p521 = scmp.lt.s32.totalorder %s29, 1
        %s522 = scalar_select %p521, %s29, 1
        %s523 = smul.addr %s522, 2
        %s524 = smul.addr %s523, 4
        %s525 = scalar_lea.vmem %s0, %s524
        %p526 = scmp.lt.s32.totalorder %s29, 1
        %s527 = scalar_select %p526, %s29, 1
        %s528 = smul.addr %s527, 4
        %s529 = scalar_lea.vmem %s1, %s528
        %p530 = scmp.lt.s32.totalorder %s29, 1
        %s531 = scalar_select %p530, %s29, 1
        %s532 = smul.addr %s531, 4
        %s533 = scalar_lea.vmem %s2, %s532
        %p534 = scmp.lt.s32.totalorder %s29, 1
        %s535 = scalar_select %p534, %s29, 1
        %s536 = smul.addr %s535, 2
        %s537 = smul.addr %s536, 2
        %s538 = scalar_lea.vmem %s12, %s537
        %v539 = vld [vmem:[%s525] sm:$0xff]
        %s540 = sld [smem:[#allocation8]]
        %v541 = vstv %s540
        %v542 = vmul.f32 %v539, %v541
        %s543 = sld [smem:[#allocation2]]
        %v544 = vstv %s543
        %v545 = vadd.f32 %v542, %v544
        %s546 = sld [smem:[#allocation8 + $0x1]]
        %v547 = vstv %s546
        %v548 = vmul.f32 %v539, %v547
        %v550 = vrot.slane %v548, 5
        %v551 = vrot.slane %v550, 4
        %v553 = vadd.f32 %v545, %v551
        %s554 = sld [smem:[#allocation8 + $0x2]]
        %v555 = vstv %s554
        %v556 = vmul.f32 %v539, %v555
        %v558 = vrot.slane %v556, 6
        %v559 = vrot.slane %v558, 4
        %v561 = vadd.f32 %v553, %v559
        %s562 = sld [smem:[#allocation8 + $0x3]]
        %v563 = vstv %s562
        %v564 = vmul.f32 %v539, %v563
        %v566 = vrot.slane %v564, 7
        %v567 = vrot.slane %v566, 4
        %v569 = vadd.f32 %v561, %v567
        %v570 = vxor.u32 %v569, 2147483648
        %v571 = vmul.f32 %v570, 1.442695
        %v572 = vpow.pop %v571
        %v573 = vadd.f32 %v572, 1.0
        %v574 = vrcp.pop %v573
        %v575 = vmul.f32 1.0, %v574
        %s576 = sld [smem:[#allocation4]]
        %v577 = vstv %s576
        %v578 = vmul.f32 %v539, %v577
        %s579 = sld [smem:[#allocation6]]
        %v580 = vstv %s579
        %v581 = vadd.f32 %v578, %v580
        %s582 = sld [smem:[#allocation4 + $0x1]]
        %v583 = vstv %s582
        %v584 = vmul.f32 %v539, %v583
        %v586 = vrot.slane %v584, 5
        %v587 = vrot.slane %v586, 4
        %v589 = vadd.f32 %v581, %v587
        %s590 = sld [smem:[#allocation4 + $0x2]]
        %v591 = vstv %s590
        %v592 = vmul.f32 %v539, %v591
        %v594 = vrot.slane %v592, 6
        %v595 = vrot.slane %v594, 4
        %v597 = vadd.f32 %v589, %v595
        %s598 = sld [smem:[#allocation4 + $0x3]]
        %v599 = vstv %s598
        %v600 = vmul.f32 %v539, %v599
        %v602 = vrot.slane %v600, 7
        %v603 = vrot.slane %v602, 4
        %v605 = vadd.f32 %v597, %v603
        %s606 = sld [smem:[#allocation4 + $0x80]]
        %v607 = vstv %s606
        %v608 = vmul.f32 %v539, %v607
        %s609 = sld [smem:[#allocation6 + $0x1]]
        %v610 = vstv %s609
        %v611 = vadd.f32 %v608, %v610
        %s612 = sld [smem:[#allocation4 + $0x81]]
        %v613 = vstv %s612
        %v614 = vmul.f32 %v539, %v613
        %v616 = vrot.slane %v614, 5
        %v617 = vrot.slane %v616, 4
        %v619 = vadd.f32 %v611, %v617
        %s620 = sld [smem:[#allocation4 + $0x82]]
        %v621 = vstv %s620
        %v622 = vmul.f32 %v539, %v621
        %v624 = vrot.slane %v622, 6
        %v625 = vrot.slane %v624, 4
        %v627 = vadd.f32 %v619, %v625
        %s628 = sld [smem:[#allocation4 + $0x83]]
        %v629 = vstv %s628
        %v630 = vmul.f32 %v539, %v629
        %v632 = vrot.slane %v630, 7
        %v633 = vrot.slane %v632, 4
        %v635 = vadd.f32 %v627, %v633
        %v637 = vlaneseq
        %v638 = vshrl.u32 %v637, 7
        %v639 = vsub.s32 0, %v638
        %v640 = vrot.slane %v605, %v639
        %v641 = vlaneseq
        %v642 = vshrl.u32 %v641, 7
        %v643 = vsub.s32 4, %v642
        %v644 = vrot.slane %v605, %v643
        %v648 = vlaneseq
        %v649 = vshrl.u32 %v648, 7
        %v650 = vsub.s32 0, %v649
        %v651 = vrot.slane %v635, %v650
        %v652 = vlaneseq
        %v653 = vshrl.u32 %v652, 7
        %v654 = vsub.s32 4, %v653
        %v655 = vrot.slane %v635, %v654
        %vm658 = vcmask 1040384
        %v659 = vsel %vm658, %v640, %v651
        %v660 = vsel %vm658, %v644, %v655
        %v662 = vlaneseq
        %v663 = vshrl.u32 %v662, 7
        %v664 = vsub.s32 0, %v663
        %v665 = vrot.slane %v575, %v664
        %v666 = vlaneseq
        %v667 = vshrl.u32 %v666, 7
        %v668 = vsub.s32 4, %v667
        %v669 = vrot.slane %v575, %v668
        %v672 = vlaneseq
        %v673 = vshrl.u32 %v672, 7
        %v674 = vsub.s32 0, %v673
        %v675 = vrot.slane %v665, %v674
        %v676 = vlaneseq
        %v677 = vshrl.u32 %v676, 7
        %v678 = vsub.s32 0, %v677
        %v679 = vrot.slane %v669, %v678
        %v680 = vmul.f32 %v659, %v675
        %v681 = vmul.f32 %v660, %v679
        %s682 = sld [smem:[#allocation9]]
        %v683 = vstv %s682
        %v684 = vmul.f32 %v539, %v683
        %s685 = sld [smem:[#allocation11]]
        %v686 = vstv %s685
        %v687 = vadd.f32 %v684, %v686
        %s688 = sld [smem:[#allocation9 + $0x1]]
        %v689 = vstv %s688
        %v690 = vmul.f32 %v539, %v689
        %v692 = vrot.slane %v690, 5
        %v693 = vrot.slane %v692, 4
        %v695 = vadd.f32 %v687, %v693
        %s696 = sld [smem:[#allocation9 + $0x2]]
        %v697 = vstv %s696
        %v698 = vmul.f32 %v539, %v697
        %v700 = vrot.slane %v698, 6
        %v701 = vrot.slane %v700, 4
        %v703 = vadd.f32 %v695, %v701
        %s704 = sld [smem:[#allocation9 + $0x3]]
        %v705 = vstv %s704
        %v706 = vmul.f32 %v539, %v705
        %v708 = vrot.slane %v706, 7
        %v709 = vrot.slane %v708, 4
        %v711 = vadd.f32 %v703, %v709
        %s712 = sld [smem:[#allocation9 + $0x80]]
        %v713 = vstv %s712
        %v714 = vmul.f32 %v539, %v713
        %s715 = sld [smem:[#allocation11 + $0x1]]
        %v716 = vstv %s715
        %v717 = vadd.f32 %v714, %v716
        %s718 = sld [smem:[#allocation9 + $0x81]]
        %v719 = vstv %s718
        %v720 = vmul.f32 %v539, %v719
        %v722 = vrot.slane %v720, 5
        %v723 = vrot.slane %v722, 4
        %v725 = vadd.f32 %v717, %v723
        %s726 = sld [smem:[#allocation9 + $0x82]]
        %v727 = vstv %s726
        %v728 = vmul.f32 %v539, %v727
        %v730 = vrot.slane %v728, 6
        %v731 = vrot.slane %v730, 4
        %v733 = vadd.f32 %v725, %v731
        %s734 = sld [smem:[#allocation9 + $0x83]]
        %v735 = vstv %s734
        %v736 = vmul.f32 %v539, %v735
        %v738 = vrot.slane %v736, 7
        %v739 = vrot.slane %v738, 4
        %v741 = vadd.f32 %v733, %v739
        %s742 = sld [smem:[#allocation9 + $0x100]]
        %v743 = vstv %s742
        %v744 = vmul.f32 %v539, %v743
        %s745 = sld [smem:[#allocation11 + $0x2]]
        %v746 = vstv %s745
        %v747 = vadd.f32 %v744, %v746
        %s748 = sld [smem:[#allocation9 + $0x101]]
        %v749 = vstv %s748
        %v750 = vmul.f32 %v539, %v749
        %v752 = vrot.slane %v750, 5
        %v753 = vrot.slane %v752, 4
        %v755 = vadd.f32 %v747, %v753
        %s756 = sld [smem:[#allocation9 + $0x102]]
        %v757 = vstv %s756
        %v758 = vmul.f32 %v539, %v757
        %v760 = vrot.slane %v758, 6
        %v761 = vrot.slane %v760, 4
        %v763 = vadd.f32 %v755, %v761
        %s764 = sld [smem:[#allocation9 + $0x103]]
        %v765 = vstv %s764
        %v766 = vmul.f32 %v539, %v765
        %v768 = vrot.slane %v766, 7
        %v769 = vrot.slane %v768, 4
        %v771 = vadd.f32 %v763, %v769
        %s772 = sld [smem:[#allocation9 + $0x180]]
        %v773 = vstv %s772
        %v774 = vmul.f32 %v539, %v773
        %s775 = sld [smem:[#allocation11 + $0x3]]
        %v776 = vstv %s775
        %v777 = vadd.f32 %v774, %v776
        %s778 = sld [smem:[#allocation9 + $0x181]]
        %v779 = vstv %s778
        %v780 = vmul.f32 %v539, %v779
        %v782 = vrot.slane %v780, 5
        %v783 = vrot.slane %v782, 4
        %v785 = vadd.f32 %v777, %v783
        %s786 = sld [smem:[#allocation9 + $0x182]]
        %v787 = vstv %s786
        %v788 = vmul.f32 %v539, %v787
        %v790 = vrot.slane %v788, 6
        %v791 = vrot.slane %v790, 4
        %v793 = vadd.f32 %v785, %v791
        %s794 = sld [smem:[#allocation9 + $0x183]]
        %v795 = vstv %s794
        %v796 = vmul.f32 %v539, %v795
        %v798 = vrot.slane %v796, 7
        %v799 = vrot.slane %v798, 4
        %v801 = vadd.f32 %v793, %v799
        %v803 = vlaneseq
        %v804 = vshrl.u32 %v803, 7
        %v805 = vsub.s32 0, %v804
        %v806 = vrot.slane %v711, %v805
        %v807 = vlaneseq
        %v808 = vshrl.u32 %v807, 7
        %v809 = vsub.s32 4, %v808
        %v810 = vrot.slane %v711, %v809
        %v814 = vlaneseq
        %v815 = vshrl.u32 %v814, 7
        %v816 = vsub.s32 0, %v815
        %v817 = vrot.slane %v741, %v816
        %v818 = vlaneseq
        %v819 = vshrl.u32 %v818, 7
        %v820 = vsub.s32 4, %v819
        %v821 = vrot.slane %v741, %v820
        %v825 = vlaneseq
        %v826 = vshrl.u32 %v825, 7
        %v827 = vsub.s32 0, %v826
        %v828 = vrot.slane %v771, %v827
        %v829 = vlaneseq
        %v830 = vshrl.u32 %v829, 7
        %v831 = vsub.s32 4, %v830
        %v832 = vrot.slane %v771, %v831
        %v836 = vlaneseq
        %v837 = vshrl.u32 %v836, 7
        %v838 = vsub.s32 0, %v837
        %v839 = vrot.slane %v801, %v838
        %v840 = vlaneseq
        %v841 = vshrl.u32 %v840, 7
        %v842 = vsub.s32 4, %v841
        %v843 = vrot.slane %v801, %v842
        %v846 = vsel %vm658, %v806, %v817
        %v847 = vsel %vm658, %v810, %v821
        %vm848 = vcmask 1041408
        %v849 = vsel %vm848, %v846, %v828
        %v850 = vsel %vm848, %v847, %v832
        %vm851 = vcmask 1042432
        %v852 = vsel %vm851, %v849, %v839
        %v853 = vsel %vm851, %v850, %v843
        %vm854 = vcmask 1043456
        %v855 = vsel %vm854, %v852, 0.0
        %v856 = vsel %vm854, %v853, 0.0
        %v857 = vadd.f32 %v855, %v856
        %858 = vadd.xlane.f32.xlu0 %v857
        %v859 = vpop.xlane.xlu0 %858
        %v860 = vrcp.pop 256.0
        %v861 = vmul.f32 %v859, %v860
        %v862 = vsub.f32 %v852, %v861
        %v863 = vsub.f32 %v853, %v861
        %v864 = vmul.f32 %v862, %v862
        %v865 = vmul.f32 %v863, %v863
        %v866 = vsel %vm854, %v864, 0.0
        %v867 = vsel %vm854, %v865, 0.0
        %v868 = vadd.f32 %v866, %v867
        %869 = vadd.xlane.f32.xlu0 %v868
        %v870 = vpop.xlane.xlu0 %869
        %v871 = vmul.f32 %v870, %v860
        %v872 = vadd.f32 %v871, 1e-05
        %v873 = vrsqrt.pop %v872
        %v874 = vmul.f32 %v862, %v873
        %v875 = vmul.f32 %v863, %v873
        %v876 = vxor.u32 %v874, 2147483648
        %v877 = vxor.u32 %v875, 2147483648
        %v878 = vmul.f32 %v876, 1.442695
        %v879 = vpow.pop %v878
        %v880 = vmul.f32 %v877, 1.442695
        %v881 = vpow.pop %v880
        %v882 = vadd.f32 %v879, 1.0
        %v883 = vadd.f32 %v881, 1.0
        %v884 = vrcp.pop %v882
        %v885 = vmul.f32 1.0, %v884
        %v886 = vrcp.pop %v883
        %v887 = vmul.f32 1.0, %v886
        %v888 = vmul.f32 %v874, %v885
        %v889 = vmul.f32 %v875, %v887
        %v890 = vld [vmem:[%s529] sm:$0xf]
        %v891 = vadd.f32 %v890, 1.0
        %893 = vset.pattern.permute.xlu0 0
        %894 = vperm.xlu0 %893, %v891
        %v895 = vpop.permute.xlu0 %894
        %v897 = vmul.f32 %v888, %v895
        %v898 = vmul.f32 %v889, %v895
        %v899 = vld [vmem:[%s533] sm:$0xf]
        %901 = vset.pattern.permute.xlu0 0
        %902 = vperm.xlu0 %901, %v899
        %v903 = vpop.permute.xlu0 %902
        %v905 = vadd.f32 %v897, %v903
        %v906 = vadd.f32 %v898, %v903
        %s907 = sld [smem:[#allocation12]]
        %v908 = vstv %s907
        %v909 = vmul.f32 %v905, %v908
        %v910 = vmul.f32 %v906, %v908
        %s911 = sld [smem:[#allocation14]]
        %v912 = vstv %s911
        %v913 = vadd.f32 %v909, %v912
        %v914 = vadd.f32 %v910, %v912
        %s915 = sld [smem:[#allocation12 + $0x1]]
        %v916 = vstv %s915
        %v917 = vmul.f32 %v905, %v916
        %v918 = vmul.f32 %v906, %v916
        %v921 = vrot.slane %v917, 1
        %v922 = vrot.slane %v918, 1
        %v925 = vadd.f32 %v913, %v921
        %v926 = vadd.f32 %v914, %v922
        %s927 = sld [smem:[#allocation12 + $0x2]]
        %v928 = vstv %s927
        %v929 = vmul.f32 %v905, %v928
        %v930 = vmul.f32 %v906, %v928
        %v933 = vrot.slane %v929, 2
        %v934 = vrot.slane %v930, 2
        %v937 = vadd.f32 %v925, %v933
        %v938 = vadd.f32 %v926, %v934
        %s939 = sld [smem:[#allocation12 + $0x3]]
        %v940 = vstv %s939
        %v941 = vmul.f32 %v905, %v940
        %v942 = vmul.f32 %v906, %v940
        %v945 = vrot.slane %v941, 3
        %v946 = vrot.slane %v942, 3
        %v949 = vadd.f32 %v937, %v945
        %v950 = vadd.f32 %v938, %v946
        %s951 = sld [smem:[#allocation12 + $0x80]]
        %v952 = vstv %s951
        %v953 = vmul.f32 %v905, %v952
        %v954 = vmul.f32 %v906, %v952
        %s955 = sld [smem:[#allocation14 + $0x1]]
        %v956 = vstv %s955
        %v957 = vadd.f32 %v953, %v956
        %v958 = vadd.f32 %v954, %v956
        %s959 = sld [smem:[#allocation12 + $0x81]]
        %v960 = vstv %s959
        %v961 = vmul.f32 %v905, %v960
        %v962 = vmul.f32 %v906, %v960
        %v965 = vrot.slane %v961, 1
        %v966 = vrot.slane %v962, 1
        %v969 = vadd.f32 %v957, %v965
        %v970 = vadd.f32 %v958, %v966
        %s971 = sld [smem:[#allocation12 + $0x82]]
        %v972 = vstv %s971
        %v973 = vmul.f32 %v905, %v972
        %v974 = vmul.f32 %v906, %v972
        %v977 = vrot.slane %v973, 2
        %v978 = vrot.slane %v974, 2
        %v981 = vadd.f32 %v969, %v977
        %v982 = vadd.f32 %v970, %v978
        %s983 = sld [smem:[#allocation12 + $0x83]]
        %v984 = vstv %s983
        %v985 = vmul.f32 %v905, %v984
        %v986 = vmul.f32 %v906, %v984
        %v989 = vrot.slane %v985, 3
        %v990 = vrot.slane %v986, 3
        %v993 = vadd.f32 %v981, %v989
        %v994 = vadd.f32 %v982, %v990
        %v997 = vrot.slane %v993, 7
        %v998 = vrot.slane %v994, 7
        %v1001 = vsel %vm658, %v949, %v997
        %v1002 = vsel %vm658, %v950, %v998
        %v1003 = vsel %vm848, %v1001, 0.0
        %v1004 = vsel %vm848, %v1002, 0.0
        %v1005 = vadd.f32 %v1003, %v1004
        %1006 = vadd.xlane.f32.xlu0 %v1005
        %v1007 = vpop.xlane.xlu0 %1006
        %v1008 = vmul.f32 %v1007, %v860
        %v1009 = vsub.f32 %v1001, %v1008
        %v1010 = vsub.f32 %v1002, %v1008
        %v1011 = vmul.f32 %v1009, %v1009
        %v1012 = vmul.f32 %v1010, %v1010
        %v1013 = vsel %vm848, %v1011, 0.0
        %v1014 = vsel %vm848, %v1012, 0.0
        %v1015 = vadd.f32 %v1013, %v1014
        %1016 = vadd.xlane.f32.xlu0 %v1015
        %v1017 = vpop.xlane.xlu0 %1016
        %v1018 = vmul.f32 %v1017, %v860
        %v1019 = vadd.f32 %v1018, 1e-05
        %v1020 = vrsqrt.pop %v1019
        %v1021 = vmul.f32 %v1009, %v1020
        %v1022 = vmul.f32 %v1010, %v1020
        %v1023 = vxor.u32 %v1021, 2147483648
        %v1024 = vxor.u32 %v1022, 2147483648
        %v1025 = vmul.f32 %v1023, 1.442695
        %v1026 = vpow.pop %v1025
        %v1027 = vmul.f32 %v1024, 1.442695
        %v1028 = vpow.pop %v1027
        %v1029 = vadd.f32 %v1026, 1.0
        %v1030 = vadd.f32 %v1028, 1.0
        %v1031 = vrcp.pop %v1029
        %v1032 = vmul.f32 1.0, %v1031
        %v1033 = vrcp.pop %v1030
        %v1034 = vmul.f32 1.0, %v1033
        %v1035 = vmul.f32 %v1021, %v1032
        %v1036 = vmul.f32 %v1022, %v1034
        %s1037 = sld [smem:[#allocation3]]
        %v1038 = vstv %s1037
        %v1039 = vmul.f32 %v1038, %v1035
        %v1040 = vmul.f32 %v1038, %v1036
        %v1041 = vadd.f32 %v680, %v1039
        %v1042 = vadd.f32 %v681, %v1040
        %v1045 = vcombine.low %v1041, %v1042
        %v1047 = vunpack.c.l.s4 1983009808
        %v1048 = vunpack.c.0.s8 %v1047
        %v1049 = vlaneseq
        %v1050 = vshrl.u32 %v1049, 7
        %v1051 = vsub.s32 %v1048, %v1050
        %v1052 = vrot.slane %v1045, %v1051
        %1054 = vst [vmem:[%s538] sm:$0xf] %v1052
        %p1055 = scmp.lt.s32.totalorder %s29, 1
        %s1056 = scalar_select %p1055, %s29, 1
        %s1057 = smul.addr %s1056, 2
        %s1058 = smul.addr %s1057, 2
        %s1059 = scalar_lea.vmem %s12, %s1058
        // Predicated region
        $region97: #{final_layer_forward.1} parent=67 // pred_check
          %p1060 = pneg %p314
        $region98: #{final_layer_forward.1} parent=67 // pred_check_branch
          %1062 = sbr.rel (%p1060) target = $region100
        $region99: #{final_layer_forward.1} parent=67 // pred_region
          _
        $region100: #{final_layer_forward.1} parent=67 // pred_fallthru
          _
      $region68: #{final_layer_forward.1} parent=5 // pred_fallthru
        _
      %p1063 = scmp.le.s32.totalorder 2, %s24
      // Predicated region
      $region101: #{final_layer_forward.1} parent=5 // pred_check
        %p1064 = pneg %p1063
      $region102: #{final_layer_forward.1} parent=5 // pred_check_branch
        %1066 = sbr.rel (%p1064) target = $region104
      $region103: #{final_layer_forward.1} parent=5 // pred_region
        %s1067 = ssub.s32 %s24, 2
        // Predicated region
        $region105: #{final_layer_forward.1} parent=103 // pred_check
          %p1068 = pneg %p320
        $region106: #{final_layer_forward.1} parent=103 // pred_check_branch
          %1070 = sbr.rel (%p1068) target = $region108
        $region107: #{final_layer_forward.1} parent=103 // pred_region
          %p1071 = scmp.lt.s32.totalorder %s30, 1
          %s1072 = scalar_select %p1071, %s30, 1
          %s1073 = smul.addr %s1072, 2
          %s1074 = smul.addr %s1073, 2
          %s1075 = scalar_lea.vmem %s12, %s1074
        $region108: #{final_layer_forward.1} parent=103 // pred_fallthru
          _
      $region104: #{final_layer_forward.1} parent=5 // pred_fallthru
        _
    $region6: #{final_layer_forward.1} parent=1 // loop_footer
      %s28 = sadd.s32 1, %s24
    $region7: #{final_layer_forward.1} parent=1 // loop_footer_branch
      %23 = sbr.rel target = $region3
    $region8: #{final_layer_forward.1} parent=1 // loop_exit
      _
    %1076 = vsyncpa [#allocation5], 1
    %s1077 = scalar_lea.sflag [#allocation5], 1
    %1078 = vsyncpa %s1077, 1
    %1079 = vsyncpa [#allocation7], 1
    %1080 = vsyncpa [#allocation10], 1
    %1081 = vsyncpa [#allocation13], 1

</llo_original>
